<compile_context>
chip_gen: v7x
topology: tpu7x:2x2x1
jax: 0.10.0
libtpu: 0.0.40
codegen_flags: <defaults>
</compile_context>

<pallas_src>
import jax
import jax.numpy as jnp
from jax.experimental import pallas as pl
from jax.experimental.pallas import tpu as pltpu


def _reexp_kernel(x_ref, o_ref):
    x = x_ref[...]
    # Rectified exponential: positive part linear (x + 1), negative part exp(x).
    o_ref[...] = jnp.where(x > 0, x + 1.0, jnp.exp(x))


_LANE_CANDIDATES = (2048, 1024, 512, 256, 128)
_TARGET_BLOCK_BYTES = 4 * 1024 * 1024   # per block; 2-deep in+out => 16 MiB VMEM
_VMEM_LIMIT_BYTES = 32 << 20            # >= scoped default on v5e/v6e/v7x, safe everywhere
_PALLAS_MIN_BYTES = 1 << 20             # below this, let XLA fuse the jnp expression


def _sublane_multiple(dtype):
    # Sub-32-bit dtypes pack along sublanes: 8 rows for 4-byte, 16 for 2-byte,
    # 32 for 1-byte elements.
    return max(8, 32 // jnp.dtype(dtype).itemsize)


def _choose_block_rows(rows, lane, itemsize, sublane):
    """Block row-count: sublane multiple, <= ~4 MiB, always >= 2 blocks when
    possible, preferring an even, exactly-dividing block count."""
    if rows < 2 * sublane:
        return rows  # single full-extent block (legal block shape)
    target = max(
        sublane,
        (_TARGET_BLOCK_BYTES // (lane * itemsize)) // sublane * sublane,
    )
    # Never let the grid collapse to one block: cap at ~half the rows so the
    # second TensorCore on v7x always has work on the "parallel" axis.
    half = max(sublane, (pl.cdiv(rows, 2) // sublane) * sublane)
    block_rows = min(target, half)
    if rows % sublane == 0:
        # Prefer an exact divisor (no masked partial trailing block), with an
        # even block count (balanced across the 2 TCs).  Bounded search.
        for want_even in (True, False):
            c = block_rows
            for _ in range(128):
                if c < sublane:
                    break
                if rows % c == 0 and (not want_even or (rows // c) % 2 == 0):
                    return c
                c -= sublane
    # Fallback: masked partial trailing block (Pallas masks OOB stores).
    return block_rows


def _reexp_pallas_2d(x2d):
    """Run the ReExp kernel over a lane-dense (rows, lane) slab."""
    rows, lane = x2d.shape
    dtype = x2d.dtype
    itemsize = jnp.dtype(dtype).itemsize
    sublane = _sublane_multiple(dtype)
    block_rows = _choose_block_rows(rows, lane, itemsize, sublane)
    grid = (pl.cdiv(rows, block_rows),)
    n = rows * lane
    return pl.pallas_call(
        _reexp_kernel,
        out_shape=jax.ShapeDtypeStruct((rows, lane), dtype),
        grid_spec=pltpu.PrefetchScalarGridSpec(
            num_scalar_prefetch=0,
            grid=grid,
            in_specs=[pl.BlockSpec((block_rows, lane), lambda i: (i, 0))],
            out_specs=pl.BlockSpec((block_rows, lane), lambda i: (i, 0)),
        ),
        compiler_params=pltpu.CompilerParams(
            dimension_semantics=("parallel",),
            vmem_limit_bytes=_VMEM_LIMIT_BYTES,
        ),
        cost_estimate=pl.CostEstimate(
            flops=2 * n,
            transcendentals=n,
            bytes_accessed=2 * n * itemsize,
        ),
    )(x2d)


def reexp_ref(x):
    """Pure-JAX reference (ELU(x) + 1)."""
    return jnp.where(x > 0, x + 1.0, jnp.exp(x))


def reexp(x):
    """Apply ReExp (ELU + 1) elementwise to an array of any shape/float dtype."""
    orig_shape = x.shape
    n = x.size
    if n == 0:
        return x
    itemsize = jnp.dtype(x.dtype).itemsize

    if n * itemsize < _PALLAS_MIN_BYTES:
        # Tiny activation: a standalone custom call costs more (extra HBM
        # round trip + launch) than it saves; let XLA fuse the expression.
        return reexp_ref(x)

    # Widest lane-dense last dim that divides n exactly -> reshape is free.
    lane = None
    for cand in _LANE_CANDIDATES:
        if n % cand == 0:
            lane = cand
            break

    flat = x.reshape(-1)
    if lane is not None:
        out = _reexp_pallas_2d(flat.reshape(n // lane, lane))
        return out.reshape(orig_shape)

    # Unaligned fallback: kernel on the widest-lane-aligned prefix, tiny
    # (< 2048 element) tail via plain jnp, then stitch.  No padded copy of the
    # input (the stitch is a single output-sized concatenate).
    lane = _LANE_CANDIDATES[0]
    aligned = (n // lane) * lane
    prefix = _reexp_pallas_2d(flat[:aligned].reshape(aligned // lane, lane))
    tail = reexp_ref(flat[aligned:])
    return jnp.concatenate([prefix.reshape(-1), tail]).reshape(orig_shape)


if __name__ == "__main__":
    key = jax.random.PRNGKey(0)
    k0, k1, k2, k3 = jax.random.split(key, 4)

    # 1) Primary small NCHW activation consistent with conv-net usage of this
    #    layer.  Small inputs deliberately take the fused-jnp fast path.
    x = jax.random.normal(k0, (2, 4, 16, 16), dtype=jnp.float32)
    y = jax.block_until_ready(reexp(x))
    assert y.shape == x.shape and y.dtype == x.dtype
    assert jnp.allclose(y, reexp_ref(x), atol=1e-6, rtol=1e-6)

    # 2) Medium 128-aligned activation: exercises the Pallas kernel
    #    (lane=2048 slab, 2 evenly-dividing blocks on the "parallel" axis).
    x_med = jax.random.normal(k1, (2, 16, 128, 128), dtype=jnp.float32)
    y_med = jax.block_until_ready(reexp(x_med))
    assert jnp.allclose(y_med, reexp_ref(x_med), atol=1e-6, rtol=1e-6)

    # 3) Non-128-multiple element count: exercises the prefix + tail path
    #    (no padded input copy).
    x_odd = jax.random.normal(k2, (5, 7, 127, 129), dtype=jnp.float32)
    y_odd = jax.block_until_ready(reexp(x_odd))
    assert jnp.allclose(y_odd, reexp_ref(x_odd), atol=1e-6, rtol=1e-6)

    # 4) bf16 path (dtype-aware sublane multiple of 16).
    x_bf16 = jax.random.normal(
        k3, (4, 16, 128, 128), dtype=jnp.float32).astype(jnp.bfloat16)
    y_bf16 = jax.block_until_ready(reexp(x_bf16))
    assert y_bf16.dtype == jnp.bfloat16
    assert jnp.allclose(y_bf16.astype(jnp.float32),
                        reexp_ref(x_bf16).astype(jnp.float32),
                        atol=2e-2, rtol=2e-2)

    print("KERNEL_OK")
</pallas_src>

<mosaic_0001>
module attributes {stable_mosaic.version = 11 : i64} {
  func.func @_reexp_kernel(%arg0: i32, %arg1: memref<128x2048xf32, #tpu.memory_space<vmem>>, %arg2: memref<128x2048xf32, #tpu.memory_space<vmem>>) attributes {dimension_semantics = [#tpu.dimension_semantics<parallel>], iteration_bounds = array<i64: 2>, scalar_prefetch = 0 : i64, scratch_operands = 0 : i64, tpu.core_type = #tpu.core_type<tc>, window_params = [{transform_indices = @transform_0, window_bounds = array<i64: 128, 2048>}, {transform_indices = @transform_1, window_bounds = array<i64: 128, 2048>}]} {
    %c0 = arith.constant 0 : index
    %c0_0 = arith.constant 0 : index
    %0 = vector.load %arg1[%c0, %c0_0] : memref<128x2048xf32, #tpu.memory_space<vmem>>, vector<128x2048xf32>
    %cst = arith.constant 0.000000e+00 : f32
    %1 = vector.broadcast %cst : f32 to vector<128x2048xf32>
    %2 = arith.cmpf ogt, %0, %1 : vector<128x2048xf32>
    %cst_1 = arith.constant 1.000000e+00 : f32
    %3 = vector.broadcast %cst_1 : f32 to vector<128x2048xf32>
    %4 = arith.addf %0, %3 : vector<128x2048xf32>
    %5 = math.exp %0 : vector<128x2048xf32>
    %6 = arith.select %2, %4, %5 : vector<128x2048xi1>, vector<128x2048xf32>
    %c0_2 = arith.constant 0 : index
    %c0_3 = arith.constant 0 : index
    %7 = vector.load %arg2[%c0_2, %c0_3] : memref<128x2048xf32, #tpu.memory_space<vmem>>, vector<128x2048xf32>
    tpu.vector_store %arg2[%c0_2, %c0_3], %6 {strides = array<i32>} : memref<128x2048xf32, #tpu.memory_space<vmem>>, vector<128x2048xf32>,
    return
  }
  func.func @transform_0(%arg0: i32) -> (i32, i32) {
    %c0_i32 = arith.constant 0 : i32
    %c0_i32_0 = arith.constant 0 : i32
    return %arg0, %c0_i32 : i32, i32
  }
  func.func @transform_1(%arg0: i32) -> (i32, i32) {
    %c0_i32 = arith.constant 0 : i32
    %c0_i32_0 = arith.constant 0 : i32
    return %arg0, %c0_i32 : i32, i32
  }
}

</mosaic_0001>

<llo_original>
// kernel: tpu_custom_call.1
$region0: #{tpu_custom_call.1}
  #allocation0 [shape = 'u32[]', space=smem, size = 0x4, offset = 0x4, fixed_abs, tag = 'smem constant byte address 0x4 - core index']
  #allocation1 [shape = 'u32[144,128]{1,0:T(1,128)}', space=vmem, size = 0x12000, scoped, tag = 'internal scratch']
  %s0 = inlined_call_operand.hbm [shape: f32[256,2048], index: 0, kind: input, shape index: {}]
  %s1 = inlined_call_operand.hbm [shape: f32[256,2048], index: 1, kind: output, shape index: {}]
  %s2 = sld [smem:[#allocation0]]
  $region41: #{tpu_custom_call.1} parent=0
    _
  %s4 = ssub.s32 1, %s2
  %s5 = scalar_select 0, %s4, %s2
  $region1: #{tpu_custom_call.1} parent=0
    #allocation2 [shape = 'u8[2097152]{0}', space=vmem, size = 0x200000, scoped, tag = 'input window, operand 0']
    #allocation3 [shape = 's32[2]{0}', space=sflag, size = 0x8, scoped, tag = 'scoped memory for tpu_custom_call.1']
    #allocation4 [shape = 's32[2]{0}', space=sflag, size = 0x8, scoped, tag = 'scoped memory for tpu_custom_call.1']
    #allocation5 [shape = 'u8[2097152]{0}', space=vmem, size = 0x200000, scoped, tag = 'output window, operand 0']
    %6 = vsyncpa [#allocation3], 0
    %s7 = scalar_lea.sflag [#allocation3], 1
    %8 = vsyncpa %s7, 0
    %9 = vsyncpa [#allocation4], 0
    %s10 = scalar_lea.sflag [#allocation4], 1
    %11 = vsyncpa %s10, 0
    loop: start=0, step=1, limit=4
    $region2: #{tpu_custom_call.1} parent=1 // loop_pre_header
      _
    $region3: #{tpu_custom_call.1} parent=1 // loop_header
      %s13 = sphi 0, %s17
      %p14 = scmp.ge.s32.totalorder %s13, 4
      %s23 = sphi 0, %s25
      %s26 = sphi 0, %s23
      %s27 = sphi 0, %s26
      %s43 = sphi 0, %s27
      %s49 = sphi 0, %s51
      %s52 = sphi 0, %s49
      %s53 = sphi 0, %s52
      %s69 = sphi 0, %s53
    $region4: #{tpu_custom_call.1} parent=1 // loop_header_branch
      %16 = sbr.rel (%p14) target = $region8
    $region5: #{tpu_custom_call.1} parent=1 // loop_body
      %s18 = ssub.s32 %s13, 1
      %s19 = ssub.s32 %s13, 2
      %s20 = sadd.s32 %s13, 1
      %s21 = ssub.s32 %s13, %s20
      %p22 = scmp.eq.s32.totalorder %s21, 0
      %s24 = sadd.s32 %s23, 1
      %s25 = scalar_select %p22, %s23, %s24
      %p28 = pneg %p22
      %p29 = scmp.eq.s32.totalorder %s13, 1
      %p30 = por %p28, %p29
      %p31 = scmp.ne.s32.totalorder %s23, %s26
      %p32 = scmp.eq.s32.totalorder %s13, 0
      %p33 = por %p31, %p32
      %p34 = scmp.ne.s32.totalorder %s23, %s26
      %p35 = scmp.eq.s32.totalorder %s18, 1
      %p36 = por %p34, %p35
      %p37 = scmp.ne.s32.totalorder %s26, %s27
      %p38 = scmp.eq.s32.totalorder %s18, 0
      %p39 = por %p37, %p38
      %p40 = scmp.ne.s32.totalorder %s26, %s27
      %p41 = scmp.eq.s32.totalorder %s19, 1
      %p42 = por %p40, %p41
      %p44 = scmp.ne.s32.totalorder %s27, %s43
      %p45 = scmp.eq.s32.totalorder %s19, 0
      %p46 = por %p44, %p45
      %s47 = ssub.s32 %s13, %s20
      %p48 = scmp.eq.s32.totalorder %s47, 0
      %s50 = sadd.s32 %s49, 1
      %s51 = scalar_select %p48, %s49, %s50
      %p54 = pneg %p48
      %p55 = scmp.eq.s32.totalorder %s13, 1
      %p56 = por %p54, %p55
      %p57 = scmp.ne.s32.totalorder %s49, %s52
      %p58 = scmp.eq.s32.totalorder %s13, 0
      %p59 = por %p57, %p58
      %p60 = scmp.ne.s32.totalorder %s49, %s52
      %p61 = scmp.eq.s32.totalorder %s18, 1
      %p62 = por %p60, %p61
      %p63 = scmp.ne.s32.totalorder %s52, %s53
      %p64 = scmp.eq.s32.totalorder %s18, 0
      %p65 = por %p63, %p64
      %p66 = scmp.ne.s32.totalorder %s52, %s53
      %p67 = scmp.eq.s32.totalorder %s19, 1
      %p68 = por %p66, %p67
      %p70 = scmp.ne.s32.totalorder %s53, %s69
      %p71 = scmp.eq.s32.totalorder %s19, 0
      %p72 = por %p70, %p71
      %p73 = scmp.le.s32.totalorder 1, %s13
      %p74 = scmp.lt.s32.totalorder %s13, 3
      %p75 = pnand %p73, %p74
      %p76 = pneg %p75
      // Predicated region
      $region9: #{tpu_custom_call.1} parent=5 // pred_check
        _
      $region10: #{tpu_custom_call.1} parent=5 // pred_check_branch
        %78 = sbr.rel (%p75) target = $region12
      $region11: #{tpu_custom_call.1} parent=5 // pred_region
        %s79 = ssub.s32 %s13, 1
      $region12: #{tpu_custom_call.1} parent=5 // pred_fallthru
        _
      %p80 = scmp.lt.s32.totalorder %s13, 2
      // Predicated region
      $region13: #{tpu_custom_call.1} parent=5 // pred_check
        %p81 = pneg %p80
      $region14: #{tpu_custom_call.1} parent=5 // pred_check_branch
        %83 = sbr.rel (%p81) target = $region16
      $region15: #{tpu_custom_call.1} parent=5 // pred_region
        // Predicated region
        $region17: #{tpu_custom_call.1} parent=15 // pred_check
          %p84 = pneg %p33
        $region18: #{tpu_custom_call.1} parent=15 // pred_check_branch
          %86 = sbr.rel (%p84) target = $region20
        $region19: #{tpu_custom_call.1} parent=15 // pred_region
          %s87 = sand.u32 %s23, 1
          %s88 = scalar_lea.sflag [#allocation3], %s87
          %s89 = sand.u32 %s23, 1
          %s90 = smul.addr %s89, 2048
          %s91 = scalar_lea.vmem [#allocation2], %s90
          %s92 = smul.u32 16, %s13
          %s94 = ssub.s32 32768, 32768
          %95 = vsyncadd %s88, %s94
          %s96 = smul.addr %s92, 16
          %s97 = smul.addr %s96, 128
          %s98 = scalar_lea.hbm %s0, %s97
          %s99 = sshll.u32 %s91, 4
          %s100 = int_to_ptr.vmem [resolvable:$true] %s99
          %105 = dma.hbm_to_vmem [thread:$0]  %s98, 32768, %s100, %s88, 2048, 2048, 128
        $region20: #{tpu_custom_call.1} parent=15 // pred_fallthru
          _
      $region16: #{tpu_custom_call.1} parent=5 // pred_fallthru
        _
      %p106 = scmp.le.s32.totalorder 1, %s13
      %p107 = scmp.lt.s32.totalorder %s13, 3
      %p108 = pnand %p106, %p107
      %p109 = pneg %p108
      // Predicated region
      $region21: #{tpu_custom_call.1} parent=5 // pred_check
        _
      $region22: #{tpu_custom_call.1} parent=5 // pred_check_branch
        %111 = sbr.rel (%p108) target = $region24
      $region23: #{tpu_custom_call.1} parent=5 // pred_region
        %s112 = ssub.s32 %s13, 1
        %s113 = sand.u32 %s26, 1
        %s114 = scalar_lea.sflag [#allocation3], %s113
        %s115 = sand.u32 %s26, 1
        %s116 = smul.addr %s115, 2048
        %s117 = scalar_lea.vmem [#allocation2], %s116
        // Predicated region
        $region25: #{tpu_custom_call.1} parent=23 // pred_check
          %p118 = pneg %p39
        $region26: #{tpu_custom_call.1} parent=23 // pred_check_branch
          %120 = sbr.rel (%p118) target = $region28
        $region27: #{tpu_custom_call.1} parent=23 // pred_region
          %121 = dma.done %s114, 32768
        $region28: #{tpu_custom_call.1} parent=23 // pred_fallthru
          _
        %s122 = sand.u32 %s26, 1
        %s123 = scalar_lea.sflag [#allocation3], %s122
        %s124 = sand.u32 %s26, 1
        %s125 = smul.addr %s124, 2048
        %s126 = scalar_lea.vmem [#allocation2], %s125
        %p127 = pneg %p39
        %p128 = pneg %p36
        %p129 = pneg %p65
        %p130 = pneg %p62
        %s131 = sand.u32 %s52, 1
        %s132 = scalar_lea.sflag [#allocation4], %s131
        %s133 = sand.u32 %s52, 1
        %s134 = smul.addr %s133, 2048
        %s135 = scalar_lea.vmem [#allocation5], %s134
        %s136 = smul.u32 16, %s18
        %s137 = smul.u32 16, %s18
        %v138 = vld [vmem:[%s117] sm:$0xff]
        %v139 = vld [vmem:[%s117 + $0x8] sm:$0xff]
        %v140 = vld [vmem:[%s117 + $0x10] sm:$0xff]
        %v141 = vld [vmem:[%s117 + $0x18] sm:$0xff]
        %v142 = vld [vmem:[%s117 + $0x20] sm:$0xff]
        %v143 = vld [vmem:[%s117 + $0x28] sm:$0xff]
        %v144 = vld [vmem:[%s117 + $0x30] sm:$0xff]
        %v145 = vld [vmem:[%s117 + $0x38] sm:$0xff]
        %v146 = vld [vmem:[%s117 + $0x40] sm:$0xff]
        %v147 = vld [vmem:[%s117 + $0x48] sm:$0xff]
        %v148 = vld [vmem:[%s117 + $0x50] sm:$0xff]
        %v149 = vld [vmem:[%s117 + $0x58] sm:$0xff]
        %v150 = vld [vmem:[%s117 + $0x60] sm:$0xff]
        %v151 = vld [vmem:[%s117 + $0x68] sm:$0xff]
        %v152 = vld [vmem:[%s117 + $0x70] sm:$0xff]
        %v153 = vld [vmem:[%s117 + $0x78] sm:$0xff]
        %v154 = vld [vmem:[%s117 + $0x80] sm:$0xff]
        %v155 = vld [vmem:[%s117 + $0x88] sm:$0xff]
        %v156 = vld [vmem:[%s117 + $0x90] sm:$0xff]
        %v157 = vld [vmem:[%s117 + $0x98] sm:$0xff]
        %v158 = vld [vmem:[%s117 + $0xa0] sm:$0xff]
        %v159 = vld [vmem:[%s117 + $0xa8] sm:$0xff]
        %v160 = vld [vmem:[%s117 + $0xb0] sm:$0xff]
        %v161 = vld [vmem:[%s117 + $0xb8] sm:$0xff]
        %v162 = vld [vmem:[%s117 + $0xc0] sm:$0xff]
        %v163 = vld [vmem:[%s117 + $0xc8] sm:$0xff]
        %v164 = vld [vmem:[%s117 + $0xd0] sm:$0xff]
        %v165 = vld [vmem:[%s117 + $0xd8] sm:$0xff]
        %v166 = vld [vmem:[%s117 + $0xe0] sm:$0xff]
        %v167 = vld [vmem:[%s117 + $0xe8] sm:$0xff]
        %v168 = vld [vmem:[%s117 + $0xf0] sm:$0xff]
        %v169 = vld [vmem:[%s117 + $0xf8] sm:$0xff]
        %v170 = vld [vmem:[%s117 + $0x100] sm:$0xff]
        %v171 = vld [vmem:[%s117 + $0x108] sm:$0xff]
        %v172 = vld [vmem:[%s117 + $0x110] sm:$0xff]
        %v173 = vld [vmem:[%s117 + $0x118] sm:$0xff]
        %v174 = vld [vmem:[%s117 + $0x120] sm:$0xff]
        %v175 = vld [vmem:[%s117 + $0x128] sm:$0xff]
        %v176 = vld [vmem:[%s117 + $0x130] sm:$0xff]
        %v177 = vld [vmem:[%s117 + $0x138] sm:$0xff]
        %v178 = vld [vmem:[%s117 + $0x140] sm:$0xff]
        %v179 = vld [vmem:[%s117 + $0x148] sm:$0xff]
        %v180 = vld [vmem:[%s117 + $0x150] sm:$0xff]
        %v181 = vld [vmem:[%s117 + $0x158] sm:$0xff]
        %v182 = vld [vmem:[%s117 + $0x160] sm:$0xff]
        %v183 = vld [vmem:[%s117 + $0x168] sm:$0xff]
        %v184 = vld [vmem:[%s117 + $0x170] sm:$0xff]
        %v185 = vld [vmem:[%s117 + $0x178] sm:$0xff]
        %v186 = vld [vmem:[%s117 + $0x180] sm:$0xff]
        %v187 = vld [vmem:[%s117 + $0x188] sm:$0xff]
        %v188 = vld [vmem:[%s117 + $0x190] sm:$0xff]
        %v189 = vld [vmem:[%s117 + $0x198] sm:$0xff]
        %v190 = vld [vmem:[%s117 + $0x1a0] sm:$0xff]
        %v191 = vld [vmem:[%s117 + $0x1a8] sm:$0xff]
        %v192 = vld [vmem:[%s117 + $0x1b0] sm:$0xff]
        %v193 = vld [vmem:[%s117 + $0x1b8] sm:$0xff]
        %v194 = vld [vmem:[%s117 + $0x1c0] sm:$0xff]
        %v195 = vld [vmem:[%s117 + $0x1c8] sm:$0xff]
        %v196 = vld [vmem:[%s117 + $0x1d0] sm:$0xff]
        %v197 = vld [vmem:[%s117 + $0x1d8] sm:$0xff]
        %v198 = vld [vmem:[%s117 + $0x1e0] sm:$0xff]
        %v199 = vld [vmem:[%s117 + $0x1e8] sm:$0xff]
        %v200 = vld [vmem:[%s117 + $0x1f0] sm:$0xff]
        %v201 = vld [vmem:[%s117 + $0x1f8] sm:$0xff]
        %v202 = vld [vmem:[%s117 + $0x200] sm:$0xff]
        %v203 = vld [vmem:[%s117 + $0x208] sm:$0xff]
        %v204 = vld [vmem:[%s117 + $0x210] sm:$0xff]
        %v205 = vld [vmem:[%s117 + $0x218] sm:$0xff]
        %v206 = vld [vmem:[%s117 + $0x220] sm:$0xff]
        %v207 = vld [vmem:[%s117 + $0x228] sm:$0xff]
        %v208 = vld [vmem:[%s117 + $0x230] sm:$0xff]
        %v209 = vld [vmem:[%s117 + $0x238] sm:$0xff]
        %v210 = vld [vmem:[%s117 + $0x240] sm:$0xff]
        %v211 = vld [vmem:[%s117 + $0x248] sm:$0xff]
        %v212 = vld [vmem:[%s117 + $0x250] sm:$0xff]
        %v213 = vld [vmem:[%s117 + $0x258] sm:$0xff]
        %v214 = vld [vmem:[%s117 + $0x260] sm:$0xff]
        %v215 = vld [vmem:[%s117 + $0x268] sm:$0xff]
        %v216 = vld [vmem:[%s117 + $0x270] sm:$0xff]
        %v217 = vld [vmem:[%s117 + $0x278] sm:$0xff]
        %v218 = vld [vmem:[%s117 + $0x280] sm:$0xff]
        %v219 = vld [vmem:[%s117 + $0x288] sm:$0xff]
        %v220 = vld [vmem:[%s117 + $0x290] sm:$0xff]
        %v221 = vld [vmem:[%s117 + $0x298] sm:$0xff]
        %v222 = vld [vmem:[%s117 + $0x2a0] sm:$0xff]
        %v223 = vld [vmem:[%s117 + $0x2a8] sm:$0xff]
        %v224 = vld [vmem:[%s117 + $0x2b0] sm:$0xff]
        %v225 = vld [vmem:[%s117 + $0x2b8] sm:$0xff]
        %v226 = vld [vmem:[%s117 + $0x2c0] sm:$0xff]
        %v227 = vld [vmem:[%s117 + $0x2c8] sm:$0xff]
        %v228 = vld [vmem:[%s117 + $0x2d0] sm:$0xff]
        %v229 = vld [vmem:[%s117 + $0x2d8] sm:$0xff]
        %v230 = vld [vmem:[%s117 + $0x2e0] sm:$0xff]
        %v231 = vld [vmem:[%s117 + $0x2e8] sm:$0xff]
        %v232 = vld [vmem:[%s117 + $0x2f0] sm:$0xff]
        %v233 = vld [vmem:[%s117 + $0x2f8] sm:$0xff]
        %v234 = vld [vmem:[%s117 + $0x300] sm:$0xff]
        %v235 = vld [vmem:[%s117 + $0x308] sm:$0xff]
        %v236 = vld [vmem:[%s117 + $0x310] sm:$0xff]
        %v237 = vld [vmem:[%s117 + $0x318] sm:$0xff]
        %v238 = vld [vmem:[%s117 + $0x320] sm:$0xff]
        %v239 = vld [vmem:[%s117 + $0x328] sm:$0xff]
        %v240 = vld [vmem:[%s117 + $0x330] sm:$0xff]
        %v241 = vld [vmem:[%s117 + $0x338] sm:$0xff]
        %v242 = vld [vmem:[%s117 + $0x340] sm:$0xff]
        %v243 = vld [vmem:[%s117 + $0x348] sm:$0xff]
        %v244 = vld [vmem:[%s117 + $0x350] sm:$0xff]
        %v245 = vld [vmem:[%s117 + $0x358] sm:$0xff]
        %v246 = vld [vmem:[%s117 + $0x360] sm:$0xff]
        %v247 = vld [vmem:[%s117 + $0x368] sm:$0xff]
        %v248 = vld [vmem:[%s117 + $0x370] sm:$0xff]
        %v249 = vld [vmem:[%s117 + $0x378] sm:$0xff]
        %v250 = vld [vmem:[%s117 + $0x380] sm:$0xff]
        %v251 = vld [vmem:[%s117 + $0x388] sm:$0xff]
        %v252 = vld [vmem:[%s117 + $0x390] sm:$0xff]
        %v253 = vld [vmem:[%s117 + $0x398] sm:$0xff]
        %v254 = vld [vmem:[%s117 + $0x3a0] sm:$0xff]
        %v255 = vld [vmem:[%s117 + $0x3a8] sm:$0xff]
        %v256 = vld [vmem:[%s117 + $0x3b0] sm:$0xff]
        %v257 = vld [vmem:[%s117 + $0x3b8] sm:$0xff]
        %v258 = vld [vmem:[%s117 + $0x3c0] sm:$0xff]
        %v259 = vld [vmem:[%s117 + $0x3c8] sm:$0xff]
        %v260 = vld [vmem:[%s117 + $0x3d0] sm:$0xff]
        %v261 = vld [vmem:[%s117 + $0x3d8] sm:$0xff]
        %v262 = vld [vmem:[%s117 + $0x3e0] sm:$0xff]
        %v263 = vld [vmem:[%s117 + $0x3e8] sm:$0xff]
        %v264 = vld [vmem:[%s117 + $0x3f0] sm:$0xff]
        %v265 = vld [vmem:[%s117 + $0x3f8] sm:$0xff]
        %v266 = vld [vmem:[%s117 + $0x400] sm:$0xff]
        %v267 = vld [vmem:[%s117 + $0x408] sm:$0xff]
        %v268 = vld [vmem:[%s117 + $0x410] sm:$0xff]
        %v269 = vld [vmem:[%s117 + $0x418] sm:$0xff]
        %v270 = vld [vmem:[%s117 + $0x420] sm:$0xff]
        %v271 = vld [vmem:[%s117 + $0x428] sm:$0xff]
        %v272 = vld [vmem:[%s117 + $0x430] sm:$0xff]
        %v273 = vld [vmem:[%s117 + $0x438] sm:$0xff]
        %v274 = vld [vmem:[%s117 + $0x440] sm:$0xff]
        %v275 = vld [vmem:[%s117 + $0x448] sm:$0xff]
        %v276 = vld [vmem:[%s117 + $0x450] sm:$0xff]
        %v277 = vld [vmem:[%s117 + $0x458] sm:$0xff]
        %v278 = vld [vmem:[%s117 + $0x460] sm:$0xff]
        %v279 = vld [vmem:[%s117 + $0x468] sm:$0xff]
        %v280 = vld [vmem:[%s117 + $0x470] sm:$0xff]
        %v281 = vld [vmem:[%s117 + $0x478] sm:$0xff]
        %v282 = vld [vmem:[%s117 + $0x480] sm:$0xff]
        %v283 = vld [vmem:[%s117 + $0x488] sm:$0xff]
        %v284 = vld [vmem:[%s117 + $0x490] sm:$0xff]
        %v285 = vld [vmem:[%s117 + $0x498] sm:$0xff]
        %v286 = vld [vmem:[%s117 + $0x4a0] sm:$0xff]
        %v287 = vld [vmem:[%s117 + $0x4a8] sm:$0xff]
        %v288 = vld [vmem:[%s117 + $0x4b0] sm:$0xff]
        %v289 = vld [vmem:[%s117 + $0x4b8] sm:$0xff]
        %v290 = vld [vmem:[%s117 + $0x4c0] sm:$0xff]
        %v291 = vld [vmem:[%s117 + $0x4c8] sm:$0xff]
        %v292 = vld [vmem:[%s117 + $0x4d0] sm:$0xff]
        %v293 = vld [vmem:[%s117 + $0x4d8] sm:$0xff]
        %v294 = vld [vmem:[%s117 + $0x4e0] sm:$0xff]
        %v295 = vld [vmem:[%s117 + $0x4e8] sm:$0xff]
        %v296 = vld [vmem:[%s117 + $0x4f0] sm:$0xff]
        %v297 = vld [vmem:[%s117 + $0x4f8] sm:$0xff]
        %v298 = vld [vmem:[%s117 + $0x500] sm:$0xff]
        %v299 = vld [vmem:[%s117 + $0x508] sm:$0xff]
        %v300 = vld [vmem:[%s117 + $0x510] sm:$0xff]
        %v301 = vld [vmem:[%s117 + $0x518] sm:$0xff]
        %v302 = vld [vmem:[%s117 + $0x520] sm:$0xff]
        %v303 = vld [vmem:[%s117 + $0x528] sm:$0xff]
        %v304 = vld [vmem:[%s117 + $0x530] sm:$0xff]
        %v305 = vld [vmem:[%s117 + $0x538] sm:$0xff]
        %v306 = vld [vmem:[%s117 + $0x540] sm:$0xff]
        %v307 = vld [vmem:[%s117 + $0x548] sm:$0xff]
        %v308 = vld [vmem:[%s117 + $0x550] sm:$0xff]
        %v309 = vld [vmem:[%s117 + $0x558] sm:$0xff]
        %v310 = vld [vmem:[%s117 + $0x560] sm:$0xff]
        %v311 = vld [vmem:[%s117 + $0x568] sm:$0xff]
        %v312 = vld [vmem:[%s117 + $0x570] sm:$0xff]
        %v313 = vld [vmem:[%s117 + $0x578] sm:$0xff]
        %v314 = vld [vmem:[%s117 + $0x580] sm:$0xff]
        %v315 = vld [vmem:[%s117 + $0x588] sm:$0xff]
        %v316 = vld [vmem:[%s117 + $0x590] sm:$0xff]
        %v317 = vld [vmem:[%s117 + $0x598] sm:$0xff]
        %v318 = vld [vmem:[%s117 + $0x5a0] sm:$0xff]
        %v319 = vld [vmem:[%s117 + $0x5a8] sm:$0xff]
        %v320 = vld [vmem:[%s117 + $0x5b0] sm:$0xff]
        %v321 = vld [vmem:[%s117 + $0x5b8] sm:$0xff]
        %v322 = vld [vmem:[%s117 + $0x5c0] sm:$0xff]
        %v323 = vld [vmem:[%s117 + $0x5c8] sm:$0xff]
        %v324 = vld [vmem:[%s117 + $0x5d0] sm:$0xff]
        %v325 = vld [vmem:[%s117 + $0x5d8] sm:$0xff]
        %v326 = vld [vmem:[%s117 + $0x5e0] sm:$0xff]
        %v327 = vld [vmem:[%s117 + $0x5e8] sm:$0xff]
        %v328 = vld [vmem:[%s117 + $0x5f0] sm:$0xff]
        %v329 = vld [vmem:[%s117 + $0x5f8] sm:$0xff]
        %v330 = vld [vmem:[%s117 + $0x600] sm:$0xff]
        %v331 = vld [vmem:[%s117 + $0x608] sm:$0xff]
        %v332 = vld [vmem:[%s117 + $0x610] sm:$0xff]
        %v333 = vld [vmem:[%s117 + $0x618] sm:$0xff]
        %v334 = vld [vmem:[%s117 + $0x620] sm:$0xff]
        %v335 = vld [vmem:[%s117 + $0x628] sm:$0xff]
        %v336 = vld [vmem:[%s117 + $0x630] sm:$0xff]
        %v337 = vld [vmem:[%s117 + $0x638] sm:$0xff]
        %v338 = vld [vmem:[%s117 + $0x640] sm:$0xff]
        %v339 = vld [vmem:[%s117 + $0x648] sm:$0xff]
        %v340 = vld [vmem:[%s117 + $0x650] sm:$0xff]
        %v341 = vld [vmem:[%s117 + $0x658] sm:$0xff]
        %v342 = vld [vmem:[%s117 + $0x660] sm:$0xff]
        %v343 = vld [vmem:[%s117 + $0x668] sm:$0xff]
        %v344 = vld [vmem:[%s117 + $0x670] sm:$0xff]
        %v345 = vld [vmem:[%s117 + $0x678] sm:$0xff]
        %v346 = vld [vmem:[%s117 + $0x680] sm:$0xff]
        %v347 = vld [vmem:[%s117 + $0x688] sm:$0xff]
        %v348 = vld [vmem:[%s117 + $0x690] sm:$0xff]
        %v349 = vld [vmem:[%s117 + $0x698] sm:$0xff]
        %v350 = vld [vmem:[%s117 + $0x6a0] sm:$0xff]
        %v351 = vld [vmem:[%s117 + $0x6a8] sm:$0xff]
        %v352 = vld [vmem:[%s117 + $0x6b0] sm:$0xff]
        %v353 = vld [vmem:[%s117 + $0x6b8] sm:$0xff]
        %v354 = vld [vmem:[%s117 + $0x6c0] sm:$0xff]
        %v355 = vld [vmem:[%s117 + $0x6c8] sm:$0xff]
        %v356 = vld [vmem:[%s117 + $0x6d0] sm:$0xff]
        %v357 = vld [vmem:[%s117 + $0x6d8] sm:$0xff]
        %v358 = vld [vmem:[%s117 + $0x6e0] sm:$0xff]
        %v359 = vld [vmem:[%s117 + $0x6e8] sm:$0xff]
        %v360 = vld [vmem:[%s117 + $0x6f0] sm:$0xff]
        %v361 = vld [vmem:[%s117 + $0x6f8] sm:$0xff]
        %v362 = vld [vmem:[%s117 + $0x700] sm:$0xff]
        %v363 = vld [vmem:[%s117 + $0x708] sm:$0xff]
        %v364 = vld [vmem:[%s117 + $0x710] sm:$0xff]
        %v365 = vld [vmem:[%s117 + $0x718] sm:$0xff]
        %v366 = vld [vmem:[%s117 + $0x720] sm:$0xff]
        %v367 = vld [vmem:[%s117 + $0x728] sm:$0xff]
        %v368 = vld [vmem:[%s117 + $0x730] sm:$0xff]
        %v369 = vld [vmem:[%s117 + $0x738] sm:$0xff]
        %v370 = vld [vmem:[%s117 + $0x740] sm:$0xff]
        %v371 = vld [vmem:[%s117 + $0x748] sm:$0xff]
        %v372 = vld [vmem:[%s117 + $0x750] sm:$0xff]
        %v373 = vld [vmem:[%s117 + $0x758] sm:$0xff]
        %v374 = vld [vmem:[%s117 + $0x760] sm:$0xff]
        %v375 = vld [vmem:[%s117 + $0x768] sm:$0xff]
        %v376 = vld [vmem:[%s117 + $0x770] sm:$0xff]
        %v377 = vld [vmem:[%s117 + $0x778] sm:$0xff]
        %v378 = vld [vmem:[%s117 + $0x780] sm:$0xff]
        %v379 = vld [vmem:[%s117 + $0x788] sm:$0xff]
        %v380 = vld [vmem:[%s117 + $0x790] sm:$0xff]
        %v381 = vld [vmem:[%s117 + $0x798] sm:$0xff]
        %v382 = vld [vmem:[%s117 + $0x7a0] sm:$0xff]
        %v383 = vld [vmem:[%s117 + $0x7a8] sm:$0xff]
        %v384 = vld [vmem:[%s117 + $0x7b0] sm:$0xff]
        %v385 = vld [vmem:[%s117 + $0x7b8] sm:$0xff]
        %v386 = vld [vmem:[%s117 + $0x7c0] sm:$0xff]
        %v387 = vld [vmem:[%s117 + $0x7c8] sm:$0xff]
        %v388 = vld [vmem:[%s117 + $0x7d0] sm:$0xff]
        %v389 = vld [vmem:[%s117 + $0x7d8] sm:$0xff]
        %v390 = vld [vmem:[%s117 + $0x7e0] sm:$0xff]
        %v391 = vld [vmem:[%s117 + $0x7e8] sm:$0xff]
        %v392 = vld [vmem:[%s117 + $0x7f0] sm:$0xff]
        %v393 = vld [vmem:[%s117 + $0x7f8] sm:$0xff]
        %vm394 = vcmp.gt.f32.partialorder %v138, 0.0
        %vm395 = vcmp.gt.f32.partialorder %v139, 0.0
        %vm396 = vcmp.gt.f32.partialorder %v140, 0.0
        %vm397 = vcmp.gt.f32.partialorder %v141, 0.0
        %vm398 = vcmp.gt.f32.partialorder %v142, 0.0
        %vm399 = vcmp.gt.f32.partialorder %v143, 0.0
        %vm400 = vcmp.gt.f32.partialorder %v144, 0.0
        %vm401 = vcmp.gt.f32.partialorder %v145, 0.0
        %vm402 = vcmp.gt.f32.partialorder %v146, 0.0
        %vm403 = vcmp.gt.f32.partialorder %v147, 0.0
        %vm404 = vcmp.gt.f32.partialorder %v148, 0.0
        %vm405 = vcmp.gt.f32.partialorder %v149, 0.0
        %vm406 = vcmp.gt.f32.partialorder %v150, 0.0
        %vm407 = vcmp.gt.f32.partialorder %v151, 0.0
        %vm408 = vcmp.gt.f32.partialorder %v152, 0.0
        %vm409 = vcmp.gt.f32.partialorder %v153, 0.0
        %vm410 = vcmp.gt.f32.partialorder %v154, 0.0
        %vm411 = vcmp.gt.f32.partialorder %v155, 0.0
        %vm412 = vcmp.gt.f32.partialorder %v156, 0.0
        %vm413 = vcmp.gt.f32.partialorder %v157, 0.0
        %vm414 = vcmp.gt.f32.partialorder %v158, 0.0
        %vm415 = vcmp.gt.f32.partialorder %v159, 0.0
        %vm416 = vcmp.gt.f32.partialorder %v160, 0.0
        %vm417 = vcmp.gt.f32.partialorder %v161, 0.0
        %vm418 = vcmp.gt.f32.partialorder %v162, 0.0
        %vm419 = vcmp.gt.f32.partialorder %v163, 0.0
        %vm420 = vcmp.gt.f32.partialorder %v164, 0.0
        %vm421 = vcmp.gt.f32.partialorder %v165, 0.0
        %vm422 = vcmp.gt.f32.partialorder %v166, 0.0
        %vm423 = vcmp.gt.f32.partialorder %v167, 0.0
        %vm424 = vcmp.gt.f32.partialorder %v168, 0.0
        %vm425 = vcmp.gt.f32.partialorder %v169, 0.0
        %vm426 = vcmp.gt.f32.partialorder %v170, 0.0
        %vm427 = vcmp.gt.f32.partialorder %v171, 0.0
        %vm428 = vcmp.gt.f32.partialorder %v172, 0.0
        %vm429 = vcmp.gt.f32.partialorder %v173, 0.0
        %vm430 = vcmp.gt.f32.partialorder %v174, 0.0
        %vm431 = vcmp.gt.f32.partialorder %v175, 0.0
        %vm432 = vcmp.gt.f32.partialorder %v176, 0.0
        %vm433 = vcmp.gt.f32.partialorder %v177, 0.0
        %vm434 = vcmp.gt.f32.partialorder %v178, 0.0
        %vm435 = vcmp.gt.f32.partialorder %v179, 0.0
        %vm436 = vcmp.gt.f32.partialorder %v180, 0.0
        %vm437 = vcmp.gt.f32.partialorder %v181, 0.0
        %vm438 = vcmp.gt.f32.partialorder %v182, 0.0
        %vm439 = vcmp.gt.f32.partialorder %v183, 0.0
        %vm440 = vcmp.gt.f32.partialorder %v184, 0.0
        %vm441 = vcmp.gt.f32.partialorder %v185, 0.0
        %vm442 = vcmp.gt.f32.partialorder %v186, 0.0
        %vm443 = vcmp.gt.f32.partialorder %v187, 0.0
        %vm444 = vcmp.gt.f32.partialorder %v188, 0.0
        %vm445 = vcmp.gt.f32.partialorder %v189, 0.0
        %vm446 = vcmp.gt.f32.partialorder %v190, 0.0
        %vm447 = vcmp.gt.f32.partialorder %v191, 0.0
        %vm448 = vcmp.gt.f32.partialorder %v192, 0.0
        %vm449 = vcmp.gt.f32.partialorder %v193, 0.0
        %vm450 = vcmp.gt.f32.partialorder %v194, 0.0
        %vm451 = vcmp.gt.f32.partialorder %v195, 0.0
        %vm452 = vcmp.gt.f32.partialorder %v196, 0.0
        %vm453 = vcmp.gt.f32.partialorder %v197, 0.0
        %vm454 = vcmp.gt.f32.partialorder %v198, 0.0
        %vm455 = vcmp.gt.f32.partialorder %v199, 0.0
        %vm456 = vcmp.gt.f32.partialorder %v200, 0.0
        %vm457 = vcmp.gt.f32.partialorder %v201, 0.0
        %vm458 = vcmp.gt.f32.partialorder %v202, 0.0
        %vm459 = vcmp.gt.f32.partialorder %v203, 0.0
        %vm460 = vcmp.gt.f32.partialorder %v204, 0.0
        %vm461 = vcmp.gt.f32.partialorder %v205, 0.0
        %vm462 = vcmp.gt.f32.partialorder %v206, 0.0
        %vm463 = vcmp.gt.f32.partialorder %v207, 0.0
        %vm464 = vcmp.gt.f32.partialorder %v208, 0.0
        %vm465 = vcmp.gt.f32.partialorder %v209, 0.0
        %vm466 = vcmp.gt.f32.partialorder %v210, 0.0
        %vm467 = vcmp.gt.f32.partialorder %v211, 0.0
        %vm468 = vcmp.gt.f32.partialorder %v212, 0.0
        %vm469 = vcmp.gt.f32.partialorder %v213, 0.0
        %vm470 = vcmp.gt.f32.partialorder %v214, 0.0
        %vm471 = vcmp.gt.f32.partialorder %v215, 0.0
        %vm472 = vcmp.gt.f32.partialorder %v216, 0.0
        %vm473 = vcmp.gt.f32.partialorder %v217, 0.0
        %vm474 = vcmp.gt.f32.partialorder %v218, 0.0
        %vm475 = vcmp.gt.f32.partialorder %v219, 0.0
        %vm476 = vcmp.gt.f32.partialorder %v220, 0.0
        %vm477 = vcmp.gt.f32.partialorder %v221, 0.0
        %vm478 = vcmp.gt.f32.partialorder %v222, 0.0
        %vm479 = vcmp.gt.f32.partialorder %v223, 0.0
        %vm480 = vcmp.gt.f32.partialorder %v224, 0.0
        %vm481 = vcmp.gt.f32.partialorder %v225, 0.0
        %vm482 = vcmp.gt.f32.partialorder %v226, 0.0
        %vm483 = vcmp.gt.f32.partialorder %v227, 0.0
        %vm484 = vcmp.gt.f32.partialorder %v228, 0.0
        %vm485 = vcmp.gt.f32.partialorder %v229, 0.0
        %vm486 = vcmp.gt.f32.partialorder %v230, 0.0
        %vm487 = vcmp.gt.f32.partialorder %v231, 0.0
        %vm488 = vcmp.gt.f32.partialorder %v232, 0.0
        %vm489 = vcmp.gt.f32.partialorder %v233, 0.0
        %vm490 = vcmp.gt.f32.partialorder %v234, 0.0
        %vm491 = vcmp.gt.f32.partialorder %v235, 0.0
        %vm492 = vcmp.gt.f32.partialorder %v236, 0.0
        %vm493 = vcmp.gt.f32.partialorder %v237, 0.0
        %vm494 = vcmp.gt.f32.partialorder %v238, 0.0
        %vm495 = vcmp.gt.f32.partialorder %v239, 0.0
        %vm496 = vcmp.gt.f32.partialorder %v240, 0.0
        %vm497 = vcmp.gt.f32.partialorder %v241, 0.0
        %vm498 = vcmp.gt.f32.partialorder %v242, 0.0
        %vm499 = vcmp.gt.f32.partialorder %v243, 0.0
        %vm500 = vcmp.gt.f32.partialorder %v244, 0.0
        %vm501 = vcmp.gt.f32.partialorder %v245, 0.0
        %vm502 = vcmp.gt.f32.partialorder %v246, 0.0
        %vm503 = vcmp.gt.f32.partialorder %v247, 0.0
        %vm504 = vcmp.gt.f32.partialorder %v248, 0.0
        %vm505 = vcmp.gt.f32.partialorder %v249, 0.0
        %vm506 = vcmp.gt.f32.partialorder %v250, 0.0
        %vm507 = vcmp.gt.f32.partialorder %v251, 0.0
        %vm508 = vcmp.gt.f32.partialorder %v252, 0.0
        %vm509 = vcmp.gt.f32.partialorder %v253, 0.0
        %vm510 = vcmp.gt.f32.partialorder %v254, 0.0
        %vm511 = vcmp.gt.f32.partialorder %v255, 0.0
        %vm512 = vcmp.gt.f32.partialorder %v256, 0.0
        %vm513 = vcmp.gt.f32.partialorder %v257, 0.0
        %vm514 = vcmp.gt.f32.partialorder %v258, 0.0
        %vm515 = vcmp.gt.f32.partialorder %v259, 0.0
        %vm516 = vcmp.gt.f32.partialorder %v260, 0.0
        %vm517 = vcmp.gt.f32.partialorder %v261, 0.0
        %vm518 = vcmp.gt.f32.partialorder %v262, 0.0
        %vm519 = vcmp.gt.f32.partialorder %v263, 0.0
        %vm520 = vcmp.gt.f32.partialorder %v264, 0.0
        %vm521 = vcmp.gt.f32.partialorder %v265, 0.0
        %vm522 = vcmp.gt.f32.partialorder %v266, 0.0
        %vm523 = vcmp.gt.f32.partialorder %v267, 0.0
        %vm524 = vcmp.gt.f32.partialorder %v268, 0.0
        %vm525 = vcmp.gt.f32.partialorder %v269, 0.0
        %vm526 = vcmp.gt.f32.partialorder %v270, 0.0
        %vm527 = vcmp.gt.f32.partialorder %v271, 0.0
        %vm528 = vcmp.gt.f32.partialorder %v272, 0.0
        %vm529 = vcmp.gt.f32.partialorder %v273, 0.0
        %vm530 = vcmp.gt.f32.partialorder %v274, 0.0
        %vm531 = vcmp.gt.f32.partialorder %v275, 0.0
        %vm532 = vcmp.gt.f32.partialorder %v276, 0.0
        %vm533 = vcmp.gt.f32.partialorder %v277, 0.0
        %vm534 = vcmp.gt.f32.partialorder %v278, 0.0
        %vm535 = vcmp.gt.f32.partialorder %v279, 0.0
        %vm536 = vcmp.gt.f32.partialorder %v280, 0.0
        %vm537 = vcmp.gt.f32.partialorder %v281, 0.0
        %vm538 = vcmp.gt.f32.partialorder %v282, 0.0
        %vm539 = vcmp.gt.f32.partialorder %v283, 0.0
        %vm540 = vcmp.gt.f32.partialorder %v284, 0.0
        %vm541 = vcmp.gt.f32.partialorder %v285, 0.0
        %vm542 = vcmp.gt.f32.partialorder %v286, 0.0
        %vm543 = vcmp.gt.f32.partialorder %v287, 0.0
        %vm544 = vcmp.gt.f32.partialorder %v288, 0.0
        %vm545 = vcmp.gt.f32.partialorder %v289, 0.0
        %vm546 = vcmp.gt.f32.partialorder %v290, 0.0
        %vm547 = vcmp.gt.f32.partialorder %v291, 0.0
        %vm548 = vcmp.gt.f32.partialorder %v292, 0.0
        %vm549 = vcmp.gt.f32.partialorder %v293, 0.0
        %vm550 = vcmp.gt.f32.partialorder %v294, 0.0
        %vm551 = vcmp.gt.f32.partialorder %v295, 0.0
        %vm552 = vcmp.gt.f32.partialorder %v296, 0.0
        %vm553 = vcmp.gt.f32.partialorder %v297, 0.0
        %vm554 = vcmp.gt.f32.partialorder %v298, 0.0
        %vm555 = vcmp.gt.f32.partialorder %v299, 0.0
        %vm556 = vcmp.gt.f32.partialorder %v300, 0.0
        %vm557 = vcmp.gt.f32.partialorder %v301, 0.0
        %vm558 = vcmp.gt.f32.partialorder %v302, 0.0
        %vm559 = vcmp.gt.f32.partialorder %v303, 0.0
        %vm560 = vcmp.gt.f32.partialorder %v304, 0.0
        %vm561 = vcmp.gt.f32.partialorder %v305, 0.0
        %vm562 = vcmp.gt.f32.partialorder %v306, 0.0
        %vm563 = vcmp.gt.f32.partialorder %v307, 0.0
        %vm564 = vcmp.gt.f32.partialorder %v308, 0.0
        %vm565 = vcmp.gt.f32.partialorder %v309, 0.0
        %vm566 = vcmp.gt.f32.partialorder %v310, 0.0
        %vm567 = vcmp.gt.f32.partialorder %v311, 0.0
        %vm568 = vcmp.gt.f32.partialorder %v312, 0.0
        %vm569 = vcmp.gt.f32.partialorder %v313, 0.0
        %vm570 = vcmp.gt.f32.partialorder %v314, 0.0
        %vm571 = vcmp.gt.f32.partialorder %v315, 0.0
        %vm572 = vcmp.gt.f32.partialorder %v316, 0.0
        %vm573 = vcmp.gt.f32.partialorder %v317, 0.0
        %vm574 = vcmp.gt.f32.partialorder %v318, 0.0
        %vm575 = vcmp.gt.f32.partialorder %v319, 0.0
        %vm576 = vcmp.gt.f32.partialorder %v320, 0.0
        %vm577 = vcmp.gt.f32.partialorder %v321, 0.0
        %vm578 = vcmp.gt.f32.partialorder %v322, 0.0
        %vm579 = vcmp.gt.f32.partialorder %v323, 0.0
        %vm580 = vcmp.gt.f32.partialorder %v324, 0.0
        %vm581 = vcmp.gt.f32.partialorder %v325, 0.0
        %vm582 = vcmp.gt.f32.partialorder %v326, 0.0
        %vm583 = vcmp.gt.f32.partialorder %v327, 0.0
        %vm584 = vcmp.gt.f32.partialorder %v328, 0.0
        %vm585 = vcmp.gt.f32.partialorder %v329, 0.0
        %vm586 = vcmp.gt.f32.partialorder %v330, 0.0
        %vm587 = vcmp.gt.f32.partialorder %v331, 0.0
        %vm588 = vcmp.gt.f32.partialorder %v332, 0.0
        %vm589 = vcmp.gt.f32.partialorder %v333, 0.0
        %vm590 = vcmp.gt.f32.partialorder %v334, 0.0
        %vm591 = vcmp.gt.f32.partialorder %v335, 0.0
        %vm592 = vcmp.gt.f32.partialorder %v336, 0.0
        %vm593 = vcmp.gt.f32.partialorder %v337, 0.0
        %vm594 = vcmp.gt.f32.partialorder %v338, 0.0
        %vm595 = vcmp.gt.f32.partialorder %v339, 0.0
        %vm596 = vcmp.gt.f32.partialorder %v340, 0.0
        %vm597 = vcmp.gt.f32.partialorder %v341, 0.0
        %vm598 = vcmp.gt.f32.partialorder %v342, 0.0
        %vm599 = vcmp.gt.f32.partialorder %v343, 0.0
        %vm600 = vcmp.gt.f32.partialorder %v344, 0.0
        %vm601 = vcmp.gt.f32.partialorder %v345, 0.0
        %vm602 = vcmp.gt.f32.partialorder %v346, 0.0
        %vm603 = vcmp.gt.f32.partialorder %v347, 0.0
        %vm604 = vcmp.gt.f32.partialorder %v348, 0.0
        %vm605 = vcmp.gt.f32.partialorder %v349, 0.0
        %vm606 = vcmp.gt.f32.partialorder %v350, 0.0
        %vm607 = vcmp.gt.f32.partialorder %v351, 0.0
        %vm608 = vcmp.gt.f32.partialorder %v352, 0.0
        %vm609 = vcmp.gt.f32.partialorder %v353, 0.0
        %vm610 = vcmp.gt.f32.partialorder %v354, 0.0
        %vm611 = vcmp.gt.f32.partialorder %v355, 0.0
        %vm612 = vcmp.gt.f32.partialorder %v356, 0.0
        %vm613 = vcmp.gt.f32.partialorder %v357, 0.0
        %vm614 = vcmp.gt.f32.partialorder %v358, 0.0
        %vm615 = vcmp.gt.f32.partialorder %v359, 0.0
        %vm616 = vcmp.gt.f32.partialorder %v360, 0.0
        %vm617 = vcmp.gt.f32.partialorder %v361, 0.0
        %vm618 = vcmp.gt.f32.partialorder %v362, 0.0
        %vm619 = vcmp.gt.f32.partialorder %v363, 0.0
        %vm620 = vcmp.gt.f32.partialorder %v364, 0.0
        %vm621 = vcmp.gt.f32.partialorder %v365, 0.0
        %vm622 = vcmp.gt.f32.partialorder %v366, 0.0
        %vm623 = vcmp.gt.f32.partialorder %v367, 0.0
        %vm624 = vcmp.gt.f32.partialorder %v368, 0.0
        %vm625 = vcmp.gt.f32.partialorder %v369, 0.0
        %vm626 = vcmp.gt.f32.partialorder %v370, 0.0
        %vm627 = vcmp.gt.f32.partialorder %v371, 0.0
        %vm628 = vcmp.gt.f32.partialorder %v372, 0.0
        %vm629 = vcmp.gt.f32.partialorder %v373, 0.0
        %vm630 = vcmp.gt.f32.partialorder %v374, 0.0
        %vm631 = vcmp.gt.f32.partialorder %v375, 0.0
        %vm632 = vcmp.gt.f32.partialorder %v376, 0.0
        %vm633 = vcmp.gt.f32.partialorder %v377, 0.0
        %vm634 = vcmp.gt.f32.partialorder %v378, 0.0
        %vm635 = vcmp.gt.f32.partialorder %v379, 0.0
        %vm636 = vcmp.gt.f32.partialorder %v380, 0.0
        %vm637 = vcmp.gt.f32.partialorder %v381, 0.0
        %vm638 = vcmp.gt.f32.partialorder %v382, 0.0
        %vm639 = vcmp.gt.f32.partialorder %v383, 0.0
        %vm640 = vcmp.gt.f32.partialorder %v384, 0.0
        %vm641 = vcmp.gt.f32.partialorder %v385, 0.0
        %vm642 = vcmp.gt.f32.partialorder %v386, 0.0
        %vm643 = vcmp.gt.f32.partialorder %v387, 0.0
        %vm644 = vcmp.gt.f32.partialorder %v388, 0.0
        %vm645 = vcmp.gt.f32.partialorder %v389, 0.0
        %vm646 = vcmp.gt.f32.partialorder %v390, 0.0
        %vm647 = vcmp.gt.f32.partialorder %v391, 0.0
        %vm648 = vcmp.gt.f32.partialorder %v392, 0.0
        %vm649 = vcmp.gt.f32.partialorder %v393, 0.0
        %v650 = vadd.f32 %v138, 1.0
        %v651 = vadd.f32 %v139, 1.0
        %v652 = vadd.f32 %v140, 1.0
        %v653 = vadd.f32 %v141, 1.0
        %v654 = vadd.f32 %v142, 1.0
        %v655 = vadd.f32 %v143, 1.0
        %v656 = vadd.f32 %v144, 1.0
        %v657 = vadd.f32 %v145, 1.0
        %v658 = vadd.f32 %v146, 1.0
        %v659 = vadd.f32 %v147, 1.0
        %v660 = vadd.f32 %v148, 1.0
        %v661 = vadd.f32 %v149, 1.0
        %v662 = vadd.f32 %v150, 1.0
        %v663 = vadd.f32 %v151, 1.0
        %v664 = vadd.f32 %v152, 1.0
        %v665 = vadd.f32 %v153, 1.0
        %v666 = vadd.f32 %v154, 1.0
        %v667 = vadd.f32 %v155, 1.0
        %v668 = vadd.f32 %v156, 1.0
        %v669 = vadd.f32 %v157, 1.0
        %v670 = vadd.f32 %v158, 1.0
        %v671 = vadd.f32 %v159, 1.0
        %v672 = vadd.f32 %v160, 1.0
        %v673 = vadd.f32 %v161, 1.0
        %v674 = vadd.f32 %v162, 1.0
        %v675 = vadd.f32 %v163, 1.0
        %v676 = vadd.f32 %v164, 1.0
        %v677 = vadd.f32 %v165, 1.0
        %v678 = vadd.f32 %v166, 1.0
        %v679 = vadd.f32 %v167, 1.0
        %v680 = vadd.f32 %v168, 1.0
        %v681 = vadd.f32 %v169, 1.0
        %v682 = vadd.f32 %v170, 1.0
        %v683 = vadd.f32 %v171, 1.0
        %v684 = vadd.f32 %v172, 1.0
        %v685 = vadd.f32 %v173, 1.0
        %v686 = vadd.f32 %v174, 1.0
        %v687 = vadd.f32 %v175, 1.0
        %v688 = vadd.f32 %v176, 1.0
        %v689 = vadd.f32 %v177, 1.0
        %v690 = vadd.f32 %v178, 1.0
        %v691 = vadd.f32 %v179, 1.0
        %v692 = vadd.f32 %v180, 1.0
        %v693 = vadd.f32 %v181, 1.0
        %v694 = vadd.f32 %v182, 1.0
        %v695 = vadd.f32 %v183, 1.0
        %v696 = vadd.f32 %v184, 1.0
        %v697 = vadd.f32 %v185, 1.0
        %v698 = vadd.f32 %v186, 1.0
        %v699 = vadd.f32 %v187, 1.0
        %v700 = vadd.f32 %v188, 1.0
        %v701 = vadd.f32 %v189, 1.0
        %v702 = vadd.f32 %v190, 1.0
        %v703 = vadd.f32 %v191, 1.0
        %v704 = vadd.f32 %v192, 1.0
        %v705 = vadd.f32 %v193, 1.0
        %v706 = vadd.f32 %v194, 1.0
        %v707 = vadd.f32 %v195, 1.0
        %v708 = vadd.f32 %v196, 1.0
        %v709 = vadd.f32 %v197, 1.0
        %v710 = vadd.f32 %v198, 1.0
        %v711 = vadd.f32 %v199, 1.0
        %v712 = vadd.f32 %v200, 1.0
        %v713 = vadd.f32 %v201, 1.0
        %v714 = vadd.f32 %v202, 1.0
        %v715 = vadd.f32 %v203, 1.0
        %v716 = vadd.f32 %v204, 1.0
        %v717 = vadd.f32 %v205, 1.0
        %v718 = vadd.f32 %v206, 1.0
        %v719 = vadd.f32 %v207, 1.0
        %v720 = vadd.f32 %v208, 1.0
        %v721 = vadd.f32 %v209, 1.0
        %v722 = vadd.f32 %v210, 1.0
        %v723 = vadd.f32 %v211, 1.0
        %v724 = vadd.f32 %v212, 1.0
        %v725 = vadd.f32 %v213, 1.0
        %v726 = vadd.f32 %v214, 1.0
        %v727 = vadd.f32 %v215, 1.0
        %v728 = vadd.f32 %v216, 1.0
        %v729 = vadd.f32 %v217, 1.0
        %v730 = vadd.f32 %v218, 1.0
        %v731 = vadd.f32 %v219, 1.0
        %v732 = vadd.f32 %v220, 1.0
        %v733 = vadd.f32 %v221, 1.0
        %v734 = vadd.f32 %v222, 1.0
        %v735 = vadd.f32 %v223, 1.0
        %v736 = vadd.f32 %v224, 1.0
        %v737 = vadd.f32 %v225, 1.0
        %v738 = vadd.f32 %v226, 1.0
        %v739 = vadd.f32 %v227, 1.0
        %v740 = vadd.f32 %v228, 1.0
        %v741 = vadd.f32 %v229, 1.0
        %v742 = vadd.f32 %v230, 1.0
        %v743 = vadd.f32 %v231, 1.0
        %v744 = vadd.f32 %v232, 1.0
        %v745 = vadd.f32 %v233, 1.0
        %v746 = vadd.f32 %v234, 1.0
        %v747 = vadd.f32 %v235, 1.0
        %v748 = vadd.f32 %v236, 1.0
        %v749 = vadd.f32 %v237, 1.0
        %v750 = vadd.f32 %v238, 1.0
        %v751 = vadd.f32 %v239, 1.0
        %v752 = vadd.f32 %v240, 1.0
        %v753 = vadd.f32 %v241, 1.0
        %v754 = vadd.f32 %v242, 1.0
        %v755 = vadd.f32 %v243, 1.0
        %v756 = vadd.f32 %v244, 1.0
        %v757 = vadd.f32 %v245, 1.0
        %v758 = vadd.f32 %v246, 1.0
        %v759 = vadd.f32 %v247, 1.0
        %v760 = vadd.f32 %v248, 1.0
        %v761 = vadd.f32 %v249, 1.0
        %v762 = vadd.f32 %v250, 1.0
        %v763 = vadd.f32 %v251, 1.0
        %v764 = vadd.f32 %v252, 1.0
        %v765 = vadd.f32 %v253, 1.0
        %v766 = vadd.f32 %v254, 1.0
        %v767 = vadd.f32 %v255, 1.0
        %v768 = vadd.f32 %v256, 1.0
        %v769 = vadd.f32 %v257, 1.0
        %v770 = vadd.f32 %v258, 1.0
        %v771 = vadd.f32 %v259, 1.0
        %v772 = vadd.f32 %v260, 1.0
        %v773 = vadd.f32 %v261, 1.0
        %v774 = vadd.f32 %v262, 1.0
        %v775 = vadd.f32 %v263, 1.0
        %v776 = vadd.f32 %v264, 1.0
        %v777 = vadd.f32 %v265, 1.0
        %v778 = vadd.f32 %v266, 1.0
        %v779 = vadd.f32 %v267, 1.0
        %v780 = vadd.f32 %v268, 1.0
        %v781 = vadd.f32 %v269, 1.0
        %v782 = vadd.f32 %v270, 1.0
        %v783 = vadd.f32 %v271, 1.0
        %v784 = vadd.f32 %v272, 1.0
        %v785 = vadd.f32 %v273, 1.0
        %v786 = vadd.f32 %v274, 1.0
        %v787 = vadd.f32 %v275, 1.0
        %v788 = vadd.f32 %v276, 1.0
        %v789 = vadd.f32 %v277, 1.0
        %v790 = vadd.f32 %v278, 1.0
        %v791 = vadd.f32 %v279, 1.0
        %v792 = vadd.f32 %v280, 1.0
        %v793 = vadd.f32 %v281, 1.0
        %v794 = vadd.f32 %v282, 1.0
        %v795 = vadd.f32 %v283, 1.0
        %v796 = vadd.f32 %v284, 1.0
        %v797 = vadd.f32 %v285, 1.0
        %v798 = vadd.f32 %v286, 1.0
        %v799 = vadd.f32 %v287, 1.0
        %v800 = vadd.f32 %v288, 1.0
        %v801 = vadd.f32 %v289, 1.0
        %v802 = vadd.f32 %v290, 1.0
        %v803 = vadd.f32 %v291, 1.0
        %v804 = vadd.f32 %v292, 1.0
        %v805 = vadd.f32 %v293, 1.0
        %v806 = vadd.f32 %v294, 1.0
        %v807 = vadd.f32 %v295, 1.0
        %v808 = vadd.f32 %v296, 1.0
        %v809 = vadd.f32 %v297, 1.0
        %v810 = vadd.f32 %v298, 1.0
        %v811 = vadd.f32 %v299, 1.0
        %v812 = vadd.f32 %v300, 1.0
        %v813 = vadd.f32 %v301, 1.0
        %v814 = vadd.f32 %v302, 1.0
        %v815 = vadd.f32 %v303, 1.0
        %v816 = vadd.f32 %v304, 1.0
        %v817 = vadd.f32 %v305, 1.0
        %v818 = vadd.f32 %v306, 1.0
        %v819 = vadd.f32 %v307, 1.0
        %v820 = vadd.f32 %v308, 1.0
        %v821 = vadd.f32 %v309, 1.0
        %v822 = vadd.f32 %v310, 1.0
        %v823 = vadd.f32 %v311, 1.0
        %v824 = vadd.f32 %v312, 1.0
        %v825 = vadd.f32 %v313, 1.0
        %v826 = vadd.f32 %v314, 1.0
        %v827 = vadd.f32 %v315, 1.0
        %v828 = vadd.f32 %v316, 1.0
        %v829 = vadd.f32 %v317, 1.0
        %v830 = vadd.f32 %v318, 1.0
        %v831 = vadd.f32 %v319, 1.0
        %v832 = vadd.f32 %v320, 1.0
        %v833 = vadd.f32 %v321, 1.0
        %v834 = vadd.f32 %v322, 1.0
        %v835 = vadd.f32 %v323, 1.0
        %v836 = vadd.f32 %v324, 1.0
        %v837 = vadd.f32 %v325, 1.0
        %v838 = vadd.f32 %v326, 1.0
        %v839 = vadd.f32 %v327, 1.0
        %v840 = vadd.f32 %v328, 1.0
        %v841 = vadd.f32 %v329, 1.0
        %v842 = vadd.f32 %v330, 1.0
        %v843 = vadd.f32 %v331, 1.0
        %v844 = vadd.f32 %v332, 1.0
        %v845 = vadd.f32 %v333, 1.0
        %v846 = vadd.f32 %v334, 1.0
        %v847 = vadd.f32 %v335, 1.0
        %v848 = vadd.f32 %v336, 1.0
        %v849 = vadd.f32 %v337, 1.0
        %v850 = vadd.f32 %v338, 1.0
        %v851 = vadd.f32 %v339, 1.0
        %v852 = vadd.f32 %v340, 1.0
        %v853 = vadd.f32 %v341, 1.0
        %v854 = vadd.f32 %v342, 1.0
        %v855 = vadd.f32 %v343, 1.0
        %v856 = vadd.f32 %v344, 1.0
        %v857 = vadd.f32 %v345, 1.0
        %v858 = vadd.f32 %v346, 1.0
        %v859 = vadd.f32 %v347, 1.0
        %v860 = vadd.f32 %v348, 1.0
        %v861 = vadd.f32 %v349, 1.0
        %v862 = vadd.f32 %v350, 1.0
        %v863 = vadd.f32 %v351, 1.0
        %v864 = vadd.f32 %v352, 1.0
        %v865 = vadd.f32 %v353, 1.0
        %v866 = vadd.f32 %v354, 1.0
        %v867 = vadd.f32 %v355, 1.0
        %v868 = vadd.f32 %v356, 1.0
        %v869 = vadd.f32 %v357, 1.0
        %v870 = vadd.f32 %v358, 1.0
        %v871 = vadd.f32 %v359, 1.0
        %v872 = vadd.f32 %v360, 1.0
        %v873 = vadd.f32 %v361, 1.0
        %v874 = vadd.f32 %v362, 1.0
        %v875 = vadd.f32 %v363, 1.0
        %v876 = vadd.f32 %v364, 1.0
        %v877 = vadd.f32 %v365, 1.0
        %v878 = vadd.f32 %v366, 1.0
        %v879 = vadd.f32 %v367, 1.0
        %v880 = vadd.f32 %v368, 1.0
        %v881 = vadd.f32 %v369, 1.0
        %v882 = vadd.f32 %v370, 1.0
        %v883 = vadd.f32 %v371, 1.0
        %v884 = vadd.f32 %v372, 1.0
        %v885 = vadd.f32 %v373, 1.0
        %v886 = vadd.f32 %v374, 1.0
        %v887 = vadd.f32 %v375, 1.0
        %v888 = vadd.f32 %v376, 1.0
        %v889 = vadd.f32 %v377, 1.0
        %v890 = vadd.f32 %v378, 1.0
        %v891 = vadd.f32 %v379, 1.0
        %v892 = vadd.f32 %v380, 1.0
        %v893 = vadd.f32 %v381, 1.0
        %v894 = vadd.f32 %v382, 1.0
        %v895 = vadd.f32 %v383, 1.0
        %v896 = vadd.f32 %v384, 1.0
        %v897 = vadd.f32 %v385, 1.0
        %v898 = vadd.f32 %v386, 1.0
        %v899 = vadd.f32 %v387, 1.0
        %v900 = vadd.f32 %v388, 1.0
        %v901 = vadd.f32 %v389, 1.0
        %v902 = vadd.f32 %v390, 1.0
        %v903 = vadd.f32 %v391, 1.0
        %v904 = vadd.f32 %v392, 1.0
        %v905 = vadd.f32 %v393, 1.0
        %v906 = vmul.f32 %v138, 1.442695
        %v907 = vpow.pop %v906
        %v908 = vmul.f32 %v139, 1.442695
        %v909 = vpow.pop %v908
        %v910 = vmul.f32 %v140, 1.442695
        %v911 = vpow.pop %v910
        %v912 = vmul.f32 %v141, 1.442695
        %v913 = vpow.pop %v912
        %v914 = vmul.f32 %v142, 1.442695
        %v915 = vpow.pop %v914
        %v916 = vmul.f32 %v143, 1.442695
        %v917 = vpow.pop %v916
        %v918 = vmul.f32 %v144, 1.442695
        %v919 = vpow.pop %v918
        %v920 = vmul.f32 %v145, 1.442695
        %v921 = vpow.pop %v920
        %v922 = vmul.f32 %v146, 1.442695
        %v923 = vpow.pop %v922
        %v924 = vmul.f32 %v147, 1.442695
        %v925 = vpow.pop %v924
        %v926 = vmul.f32 %v148, 1.442695
        %v927 = vpow.pop %v926
        %v928 = vmul.f32 %v149, 1.442695
        %v929 = vpow.pop %v928
        %v930 = vmul.f32 %v150, 1.442695
        %v931 = vpow.pop %v930
        %v932 = vmul.f32 %v151, 1.442695
        %v933 = vpow.pop %v932
        %v934 = vmul.f32 %v152, 1.442695
        %v935 = vpow.pop %v934
        %v936 = vmul.f32 %v153, 1.442695
        %v937 = vpow.pop %v936
        %v938 = vmul.f32 %v154, 1.442695
        %v939 = vpow.pop %v938
        %v940 = vmul.f32 %v155, 1.442695
        %v941 = vpow.pop %v940
        %v942 = vmul.f32 %v156, 1.442695
        %v943 = vpow.pop %v942
        %v944 = vmul.f32 %v157, 1.442695
        %v945 = vpow.pop %v944
        %v946 = vmul.f32 %v158, 1.442695
        %v947 = vpow.pop %v946
        %v948 = vmul.f32 %v159, 1.442695
        %v949 = vpow.pop %v948
        %v950 = vmul.f32 %v160, 1.442695
        %v951 = vpow.pop %v950
        %v952 = vmul.f32 %v161, 1.442695
        %v953 = vpow.pop %v952
        %v954 = vmul.f32 %v162, 1.442695
        %v955 = vpow.pop %v954
        %v956 = vmul.f32 %v163, 1.442695
        %v957 = vpow.pop %v956
        %v958 = vmul.f32 %v164, 1.442695
        %v959 = vpow.pop %v958
        %v960 = vmul.f32 %v165, 1.442695
        %v961 = vpow.pop %v960
        %v962 = vmul.f32 %v166, 1.442695
        %v963 = vpow.pop %v962
        %v964 = vmul.f32 %v167, 1.442695
        %v965 = vpow.pop %v964
        %v966 = vmul.f32 %v168, 1.442695
        %v967 = vpow.pop %v966
        %v968 = vmul.f32 %v169, 1.442695
        %v969 = vpow.pop %v968
        %v970 = vmul.f32 %v170, 1.442695
        %v971 = vpow.pop %v970
        %v972 = vmul.f32 %v171, 1.442695
        %v973 = vpow.pop %v972
        %v974 = vmul.f32 %v172, 1.442695
        %v975 = vpow.pop %v974
        %v976 = vmul.f32 %v173, 1.442695
        %v977 = vpow.pop %v976
        %v978 = vmul.f32 %v174, 1.442695
        %v979 = vpow.pop %v978
        %v980 = vmul.f32 %v175, 1.442695
        %v981 = vpow.pop %v980
        %v982 = vmul.f32 %v176, 1.442695
        %v983 = vpow.pop %v982
        %v984 = vmul.f32 %v177, 1.442695
        %v985 = vpow.pop %v984
        %v986 = vmul.f32 %v178, 1.442695
        %v987 = vpow.pop %v986
        %v988 = vmul.f32 %v179, 1.442695
        %v989 = vpow.pop %v988
        %v990 = vmul.f32 %v180, 1.442695
        %v991 = vpow.pop %v990
        %v992 = vmul.f32 %v181, 1.442695
        %v993 = vpow.pop %v992
        %v994 = vmul.f32 %v182, 1.442695
        %v995 = vpow.pop %v994
        %v996 = vmul.f32 %v183, 1.442695
        %v997 = vpow.pop %v996
        %v998 = vmul.f32 %v184, 1.442695
        %v999 = vpow.pop %v998
        %v1000 = vmul.f32 %v185, 1.442695
        %v1001 = vpow.pop %v1000
        %v1002 = vmul.f32 %v186, 1.442695
        %v1003 = vpow.pop %v1002
        %v1004 = vmul.f32 %v187, 1.442695
        %v1005 = vpow.pop %v1004
        %v1006 = vmul.f32 %v188, 1.442695
        %v1007 = vpow.pop %v1006
        %v1008 = vmul.f32 %v189, 1.442695
        %v1009 = vpow.pop %v1008
        %v1010 = vmul.f32 %v190, 1.442695
        %v1011 = vpow.pop %v1010
        %v1012 = vmul.f32 %v191, 1.442695
        %v1013 = vpow.pop %v1012
        %v1014 = vmul.f32 %v192, 1.442695
        %v1015 = vpow.pop %v1014
        %v1016 = vmul.f32 %v193, 1.442695
        %v1017 = vpow.pop %v1016
        %v1018 = vmul.f32 %v194, 1.442695
        %v1019 = vpow.pop %v1018
        %v1020 = vmul.f32 %v195, 1.442695
        %v1021 = vpow.pop %v1020
        %v1022 = vmul.f32 %v196, 1.442695
        %v1023 = vpow.pop %v1022
        %v1024 = vmul.f32 %v197, 1.442695
        %v1025 = vpow.pop %v1024
        %v1026 = vmul.f32 %v198, 1.442695
        %v1027 = vpow.pop %v1026
        %v1028 = vmul.f32 %v199, 1.442695
        %v1029 = vpow.pop %v1028
        %v1030 = vmul.f32 %v200, 1.442695
        %v1031 = vpow.pop %v1030
        %v1032 = vmul.f32 %v201, 1.442695
        %v1033 = vpow.pop %v1032
        %v1034 = vmul.f32 %v202, 1.442695
        %v1035 = vpow.pop %v1034
        %v1036 = vmul.f32 %v203, 1.442695
        %v1037 = vpow.pop %v1036
        %v1038 = vmul.f32 %v204, 1.442695
        %v1039 = vpow.pop %v1038
        %v1040 = vmul.f32 %v205, 1.442695
        %v1041 = vpow.pop %v1040
        %v1042 = vmul.f32 %v206, 1.442695
        %v1043 = vpow.pop %v1042
        %v1044 = vmul.f32 %v207, 1.442695
        %v1045 = vpow.pop %v1044
        %v1046 = vmul.f32 %v208, 1.442695
        %v1047 = vpow.pop %v1046
        %v1048 = vmul.f32 %v209, 1.442695
        %v1049 = vpow.pop %v1048
        %v1050 = vmul.f32 %v210, 1.442695
        %v1051 = vpow.pop %v1050
        %v1052 = vmul.f32 %v211, 1.442695
        %v1053 = vpow.pop %v1052
        %v1054 = vmul.f32 %v212, 1.442695
        %v1055 = vpow.pop %v1054
        %v1056 = vmul.f32 %v213, 1.442695
        %v1057 = vpow.pop %v1056
        %v1058 = vmul.f32 %v214, 1.442695
        %v1059 = vpow.pop %v1058
        %v1060 = vmul.f32 %v215, 1.442695
        %v1061 = vpow.pop %v1060
        %v1062 = vmul.f32 %v216, 1.442695
        %v1063 = vpow.pop %v1062
        %v1064 = vmul.f32 %v217, 1.442695
        %v1065 = vpow.pop %v1064
        %v1066 = vmul.f32 %v218, 1.442695
        %v1067 = vpow.pop %v1066
        %v1068 = vmul.f32 %v219, 1.442695
        %v1069 = vpow.pop %v1068
        %v1070 = vmul.f32 %v220, 1.442695
        %v1071 = vpow.pop %v1070
        %v1072 = vmul.f32 %v221, 1.442695
        %v1073 = vpow.pop %v1072
        %v1074 = vmul.f32 %v222, 1.442695
        %v1075 = vpow.pop %v1074
        %v1076 = vmul.f32 %v223, 1.442695
        %v1077 = vpow.pop %v1076
        %v1078 = vmul.f32 %v224, 1.442695
        %v1079 = vpow.pop %v1078
        %v1080 = vmul.f32 %v225, 1.442695
        %v1081 = vpow.pop %v1080
        %v1082 = vmul.f32 %v226, 1.442695
        %v1083 = vpow.pop %v1082
        %v1084 = vmul.f32 %v227, 1.442695
        %v1085 = vpow.pop %v1084
        %v1086 = vmul.f32 %v228, 1.442695
        %v1087 = vpow.pop %v1086
        %v1088 = vmul.f32 %v229, 1.442695
        %v1089 = vpow.pop %v1088
        %v1090 = vmul.f32 %v230, 1.442695
        %v1091 = vpow.pop %v1090
        %v1092 = vmul.f32 %v231, 1.442695
        %v1093 = vpow.pop %v1092
        %v1094 = vmul.f32 %v232, 1.442695
        %v1095 = vpow.pop %v1094
        %v1096 = vmul.f32 %v233, 1.442695
        %v1097 = vpow.pop %v1096
        %v1098 = vmul.f32 %v234, 1.442695
        %v1099 = vpow.pop %v1098
        %v1100 = vmul.f32 %v235, 1.442695
        %v1101 = vpow.pop %v1100
        %v1102 = vmul.f32 %v236, 1.442695
        %v1103 = vpow.pop %v1102
        %v1104 = vmul.f32 %v237, 1.442695
        %v1105 = vpow.pop %v1104
        %v1106 = vmul.f32 %v238, 1.442695
        %v1107 = vpow.pop %v1106
        %v1108 = vmul.f32 %v239, 1.442695
        %v1109 = vpow.pop %v1108
        %v1110 = vmul.f32 %v240, 1.442695
        %v1111 = vpow.pop %v1110
        %v1112 = vmul.f32 %v241, 1.442695
        %v1113 = vpow.pop %v1112
        %v1114 = vmul.f32 %v242, 1.442695
        %v1115 = vpow.pop %v1114
        %v1116 = vmul.f32 %v243, 1.442695
        %v1117 = vpow.pop %v1116
        %v1118 = vmul.f32 %v244, 1.442695
        %v1119 = vpow.pop %v1118
        %v1120 = vmul.f32 %v245, 1.442695
        %v1121 = vpow.pop %v1120
        %v1122 = vmul.f32 %v246, 1.442695
        %v1123 = vpow.pop %v1122
        %v1124 = vmul.f32 %v247, 1.442695
        %v1125 = vpow.pop %v1124
        %v1126 = vmul.f32 %v248, 1.442695
        %v1127 = vpow.pop %v1126
        %v1128 = vmul.f32 %v249, 1.442695
        %v1129 = vpow.pop %v1128
        %v1130 = vmul.f32 %v250, 1.442695
        %v1131 = vpow.pop %v1130
        %v1132 = vmul.f32 %v251, 1.442695
        %v1133 = vpow.pop %v1132
        %v1134 = vmul.f32 %v252, 1.442695
        %v1135 = vpow.pop %v1134
        %v1136 = vmul.f32 %v253, 1.442695
        %v1137 = vpow.pop %v1136
        %v1138 = vmul.f32 %v254, 1.442695
        %v1139 = vpow.pop %v1138
        %v1140 = vmul.f32 %v255, 1.442695
        %v1141 = vpow.pop %v1140
        %v1142 = vmul.f32 %v256, 1.442695
        %v1143 = vpow.pop %v1142
        %v1144 = vmul.f32 %v257, 1.442695
        %v1145 = vpow.pop %v1144
        %v1146 = vmul.f32 %v258, 1.442695
        %v1147 = vpow.pop %v1146
        %v1148 = vmul.f32 %v259, 1.442695
        %v1149 = vpow.pop %v1148
        %v1150 = vmul.f32 %v260, 1.442695
        %v1151 = vpow.pop %v1150
        %v1152 = vmul.f32 %v261, 1.442695
        %v1153 = vpow.pop %v1152
        %v1154 = vmul.f32 %v262, 1.442695
        %v1155 = vpow.pop %v1154
        %v1156 = vmul.f32 %v263, 1.442695
        %v1157 = vpow.pop %v1156
        %v1158 = vmul.f32 %v264, 1.442695
        %v1159 = vpow.pop %v1158
        %v1160 = vmul.f32 %v265, 1.442695
        %v1161 = vpow.pop %v1160
        %v1162 = vmul.f32 %v266, 1.442695
        %v1163 = vpow.pop %v1162
        %v1164 = vmul.f32 %v267, 1.442695
        %v1165 = vpow.pop %v1164
        %v1166 = vmul.f32 %v268, 1.442695
        %v1167 = vpow.pop %v1166
        %v1168 = vmul.f32 %v269, 1.442695
        %v1169 = vpow.pop %v1168
        %v1170 = vmul.f32 %v270, 1.442695
        %v1171 = vpow.pop %v1170
        %v1172 = vmul.f32 %v271, 1.442695
        %v1173 = vpow.pop %v1172
        %v1174 = vmul.f32 %v272, 1.442695
        %v1175 = vpow.pop %v1174
        %v1176 = vmul.f32 %v273, 1.442695
        %v1177 = vpow.pop %v1176
        %v1178 = vmul.f32 %v274, 1.442695
        %v1179 = vpow.pop %v1178
        %v1180 = vmul.f32 %v275, 1.442695
        %v1181 = vpow.pop %v1180
        %v1182 = vmul.f32 %v276, 1.442695
        %v1183 = vpow.pop %v1182
        %v1184 = vmul.f32 %v277, 1.442695
        %v1185 = vpow.pop %v1184
        %v1186 = vmul.f32 %v278, 1.442695
        %v1187 = vpow.pop %v1186
        %v1188 = vmul.f32 %v279, 1.442695
        %v1189 = vpow.pop %v1188
        %v1190 = vmul.f32 %v280, 1.442695
        %v1191 = vpow.pop %v1190
        %v1192 = vmul.f32 %v281, 1.442695
        %v1193 = vpow.pop %v1192
        %v1194 = vmul.f32 %v282, 1.442695
        %v1195 = vpow.pop %v1194
        %v1196 = vmul.f32 %v283, 1.442695
        %v1197 = vpow.pop %v1196
        %v1198 = vmul.f32 %v284, 1.442695
        %v1199 = vpow.pop %v1198
        %v1200 = vmul.f32 %v285, 1.442695
        %v1201 = vpow.pop %v1200
        %v1202 = vmul.f32 %v286, 1.442695
        %v1203 = vpow.pop %v1202
        %v1204 = vmul.f32 %v287, 1.442695
        %v1205 = vpow.pop %v1204
        %v1206 = vmul.f32 %v288, 1.442695
        %v1207 = vpow.pop %v1206
        %v1208 = vmul.f32 %v289, 1.442695
        %v1209 = vpow.pop %v1208
        %v1210 = vmul.f32 %v290, 1.442695
        %v1211 = vpow.pop %v1210
        %v1212 = vmul.f32 %v291, 1.442695
        %v1213 = vpow.pop %v1212
        %v1214 = vmul.f32 %v292, 1.442695
        %v1215 = vpow.pop %v1214
        %v1216 = vmul.f32 %v293, 1.442695
        %v1217 = vpow.pop %v1216
        %v1218 = vmul.f32 %v294, 1.442695
        %v1219 = vpow.pop %v1218
        %v1220 = vmul.f32 %v295, 1.442695
        %v1221 = vpow.pop %v1220
        %v1222 = vmul.f32 %v296, 1.442695
        %v1223 = vpow.pop %v1222
        %v1224 = vmul.f32 %v297, 1.442695
        %v1225 = vpow.pop %v1224
        %v1226 = vmul.f32 %v298, 1.442695
        %v1227 = vpow.pop %v1226
        %v1228 = vmul.f32 %v299, 1.442695
        %v1229 = vpow.pop %v1228
        %v1230 = vmul.f32 %v300, 1.442695
        %v1231 = vpow.pop %v1230
        %v1232 = vmul.f32 %v301, 1.442695
        %v1233 = vpow.pop %v1232
        %v1234 = vmul.f32 %v302, 1.442695
        %v1235 = vpow.pop %v1234
        %v1236 = vmul.f32 %v303, 1.442695
        %v1237 = vpow.pop %v1236
        %v1238 = vmul.f32 %v304, 1.442695
        %v1239 = vpow.pop %v1238
        %v1240 = vmul.f32 %v305, 1.442695
        %v1241 = vpow.pop %v1240
        %v1242 = vmul.f32 %v306, 1.442695
        %v1243 = vpow.pop %v1242
        %v1244 = vmul.f32 %v307, 1.442695
        %v1245 = vpow.pop %v1244
        %v1246 = vmul.f32 %v308, 1.442695
        %v1247 = vpow.pop %v1246
        %v1248 = vmul.f32 %v309, 1.442695
        %v1249 = vpow.pop %v1248
        %v1250 = vmul.f32 %v310, 1.442695
        %v1251 = vpow.pop %v1250
        %v1252 = vmul.f32 %v311, 1.442695
        %v1253 = vpow.pop %v1252
        %v1254 = vmul.f32 %v312, 1.442695
        %v1255 = vpow.pop %v1254
        %v1256 = vmul.f32 %v313, 1.442695
        %v1257 = vpow.pop %v1256
        %v1258 = vmul.f32 %v314, 1.442695
        %v1259 = vpow.pop %v1258
        %v1260 = vmul.f32 %v315, 1.442695
        %v1261 = vpow.pop %v1260
        %v1262 = vmul.f32 %v316, 1.442695
        %v1263 = vpow.pop %v1262
        %v1264 = vmul.f32 %v317, 1.442695
        %v1265 = vpow.pop %v1264
        %v1266 = vmul.f32 %v318, 1.442695
        %v1267 = vpow.pop %v1266
        %v1268 = vmul.f32 %v319, 1.442695
        %v1269 = vpow.pop %v1268
        %v1270 = vmul.f32 %v320, 1.442695
        %v1271 = vpow.pop %v1270
        %v1272 = vmul.f32 %v321, 1.442695
        %v1273 = vpow.pop %v1272
        %v1274 = vmul.f32 %v322, 1.442695
        %v1275 = vpow.pop %v1274
        %v1276 = vmul.f32 %v323, 1.442695
        %v1277 = vpow.pop %v1276
        %v1278 = vmul.f32 %v324, 1.442695
        %v1279 = vpow.pop %v1278
        %v1280 = vmul.f32 %v325, 1.442695
        %v1281 = vpow.pop %v1280
        %v1282 = vmul.f32 %v326, 1.442695
        %v1283 = vpow.pop %v1282
        %v1284 = vmul.f32 %v327, 1.442695
        %v1285 = vpow.pop %v1284
        %v1286 = vmul.f32 %v328, 1.442695
        %v1287 = vpow.pop %v1286
        %v1288 = vmul.f32 %v329, 1.442695
        %v1289 = vpow.pop %v1288
        %v1290 = vmul.f32 %v330, 1.442695
        %v1291 = vpow.pop %v1290
        %v1292 = vmul.f32 %v331, 1.442695
        %v1293 = vpow.pop %v1292
        %v1294 = vmul.f32 %v332, 1.442695
        %v1295 = vpow.pop %v1294
        %v1296 = vmul.f32 %v333, 1.442695
        %v1297 = vpow.pop %v1296
        %v1298 = vmul.f32 %v334, 1.442695
        %v1299 = vpow.pop %v1298
        %v1300 = vmul.f32 %v335, 1.442695
        %v1301 = vpow.pop %v1300
        %v1302 = vmul.f32 %v336, 1.442695
        %v1303 = vpow.pop %v1302
        %v1304 = vmul.f32 %v337, 1.442695
        %v1305 = vpow.pop %v1304
        %v1306 = vmul.f32 %v338, 1.442695
        %v1307 = vpow.pop %v1306
        %v1308 = vmul.f32 %v339, 1.442695
        %v1309 = vpow.pop %v1308
        %v1310 = vmul.f32 %v340, 1.442695
        %v1311 = vpow.pop %v1310
        %v1312 = vmul.f32 %v341, 1.442695
        %v1313 = vpow.pop %v1312
        %v1314 = vmul.f32 %v342, 1.442695
        %v1315 = vpow.pop %v1314
        %v1316 = vmul.f32 %v343, 1.442695
        %v1317 = vpow.pop %v1316
        %v1318 = vmul.f32 %v344, 1.442695
        %v1319 = vpow.pop %v1318
        %v1320 = vmul.f32 %v345, 1.442695
        %v1321 = vpow.pop %v1320
        %v1322 = vmul.f32 %v346, 1.442695
        %v1323 = vpow.pop %v1322
        %v1324 = vmul.f32 %v347, 1.442695
        %v1325 = vpow.pop %v1324
        %v1326 = vmul.f32 %v348, 1.442695
        %v1327 = vpow.pop %v1326
        %v1328 = vmul.f32 %v349, 1.442695
        %v1329 = vpow.pop %v1328
        %v1330 = vmul.f32 %v350, 1.442695
        %v1331 = vpow.pop %v1330
        %v1332 = vmul.f32 %v351, 1.442695
        %v1333 = vpow.pop %v1332
        %v1334 = vmul.f32 %v352, 1.442695
        %v1335 = vpow.pop %v1334
        %v1336 = vmul.f32 %v353, 1.442695
        %v1337 = vpow.pop %v1336
        %v1338 = vmul.f32 %v354, 1.442695
        %v1339 = vpow.pop %v1338
        %v1340 = vmul.f32 %v355, 1.442695
        %v1341 = vpow.pop %v1340
        %v1342 = vmul.f32 %v356, 1.442695
        %v1343 = vpow.pop %v1342
        %v1344 = vmul.f32 %v357, 1.442695
        %v1345 = vpow.pop %v1344
        %v1346 = vmul.f32 %v358, 1.442695
        %v1347 = vpow.pop %v1346
        %v1348 = vmul.f32 %v359, 1.442695
        %v1349 = vpow.pop %v1348
        %v1350 = vmul.f32 %v360, 1.442695
        %v1351 = vpow.pop %v1350
        %v1352 = vmul.f32 %v361, 1.442695
        %v1353 = vpow.pop %v1352
        %v1354 = vmul.f32 %v362, 1.442695
        %v1355 = vpow.pop %v1354
        %v1356 = vmul.f32 %v363, 1.442695
        %v1357 = vpow.pop %v1356
        %v1358 = vmul.f32 %v364, 1.442695
        %v1359 = vpow.pop %v1358
        %v1360 = vmul.f32 %v365, 1.442695
        %v1361 = vpow.pop %v1360
        %v1362 = vmul.f32 %v366, 1.442695
        %v1363 = vpow.pop %v1362
        %v1364 = vmul.f32 %v367, 1.442695
        %v1365 = vpow.pop %v1364
        %v1366 = vmul.f32 %v368, 1.442695
        %v1367 = vpow.pop %v1366
        %v1368 = vmul.f32 %v369, 1.442695
        %v1369 = vpow.pop %v1368
        %v1370 = vmul.f32 %v370, 1.442695
        %v1371 = vpow.pop %v1370
        %v1372 = vmul.f32 %v371, 1.442695
        %v1373 = vpow.pop %v1372
        %v1374 = vmul.f32 %v372, 1.442695
        %v1375 = vpow.pop %v1374
        %v1376 = vmul.f32 %v373, 1.442695
        %v1377 = vpow.pop %v1376
        %v1378 = vmul.f32 %v374, 1.442695
        %v1379 = vpow.pop %v1378
        %v1380 = vmul.f32 %v375, 1.442695
        %v1381 = vpow.pop %v1380
        %v1382 = vmul.f32 %v376, 1.442695
        %v1383 = vpow.pop %v1382
        %v1384 = vmul.f32 %v377, 1.442695
        %v1385 = vpow.pop %v1384
        %v1386 = vmul.f32 %v378, 1.442695
        %v1387 = vpow.pop %v1386
        %v1388 = vmul.f32 %v379, 1.442695
        %v1389 = vpow.pop %v1388
        %v1390 = vmul.f32 %v380, 1.442695
        %v1391 = vpow.pop %v1390
        %v1392 = vmul.f32 %v381, 1.442695
        %v1393 = vpow.pop %v1392
        %v1394 = vmul.f32 %v382, 1.442695
        %v1395 = vpow.pop %v1394
        %v1396 = vmul.f32 %v383, 1.442695
        %v1397 = vpow.pop %v1396
        %v1398 = vmul.f32 %v384, 1.442695
        %v1399 = vpow.pop %v1398
        %v1400 = vmul.f32 %v385, 1.442695
        %v1401 = vpow.pop %v1400
        %v1402 = vmul.f32 %v386, 1.442695
        %v1403 = vpow.pop %v1402
        %v1404 = vmul.f32 %v387, 1.442695
        %v1405 = vpow.pop %v1404
        %v1406 = vmul.f32 %v388, 1.442695
        %v1407 = vpow.pop %v1406
        %v1408 = vmul.f32 %v389, 1.442695
        %v1409 = vpow.pop %v1408
        %v1410 = vmul.f32 %v390, 1.442695
        %v1411 = vpow.pop %v1410
        %v1412 = vmul.f32 %v391, 1.442695
        %v1413 = vpow.pop %v1412
        %v1414 = vmul.f32 %v392, 1.442695
        %v1415 = vpow.pop %v1414
        %v1416 = vmul.f32 %v393, 1.442695
        %v1417 = vpow.pop %v1416
        %v1418 = vsel %vm394, %v650, %v907
        %v1419 = vsel %vm395, %v651, %v909
        %v1420 = vsel %vm396, %v652, %v911
        %v1421 = vsel %vm397, %v653, %v913
        %v1422 = vsel %vm398, %v654, %v915
        %v1423 = vsel %vm399, %v655, %v917
        %v1424 = vsel %vm400, %v656, %v919
        %v1425 = vsel %vm401, %v657, %v921
        %v1426 = vsel %vm402, %v658, %v923
        %v1427 = vsel %vm403, %v659, %v925
        %v1428 = vsel %vm404, %v660, %v927
        %v1429 = vsel %vm405, %v661, %v929
        %v1430 = vsel %vm406, %v662, %v931
        %v1431 = vsel %vm407, %v663, %v933
        %v1432 = vsel %vm408, %v664, %v935
        %v1433 = vsel %vm409, %v665, %v937
        %v1434 = vsel %vm410, %v666, %v939
        %v1435 = vsel %vm411, %v667, %v941
        %v1436 = vsel %vm412, %v668, %v943
        %v1437 = vsel %vm413, %v669, %v945
        %v1438 = vsel %vm414, %v670, %v947
        %v1439 = vsel %vm415, %v671, %v949
        %v1440 = vsel %vm416, %v672, %v951
        %v1441 = vsel %vm417, %v673, %v953
        %v1442 = vsel %vm418, %v674, %v955
        %v1443 = vsel %vm419, %v675, %v957
        %v1444 = vsel %vm420, %v676, %v959
        %v1445 = vsel %vm421, %v677, %v961
        %v1446 = vsel %vm422, %v678, %v963
        %v1447 = vsel %vm423, %v679, %v965
        %v1448 = vsel %vm424, %v680, %v967
        %v1449 = vsel %vm425, %v681, %v969
        %v1450 = vsel %vm426, %v682, %v971
        %v1451 = vsel %vm427, %v683, %v973
        %v1452 = vsel %vm428, %v684, %v975
        %v1453 = vsel %vm429, %v685, %v977
        %v1454 = vsel %vm430, %v686, %v979
        %v1455 = vsel %vm431, %v687, %v981
        %v1456 = vsel %vm432, %v688, %v983
        %v1457 = vsel %vm433, %v689, %v985
        %v1458 = vsel %vm434, %v690, %v987
        %v1459 = vsel %vm435, %v691, %v989
        %v1460 = vsel %vm436, %v692, %v991
        %v1461 = vsel %vm437, %v693, %v993
        %v1462 = vsel %vm438, %v694, %v995
        %v1463 = vsel %vm439, %v695, %v997
        %v1464 = vsel %vm440, %v696, %v999
        %v1465 = vsel %vm441, %v697, %v1001
        %v1466 = vsel %vm442, %v698, %v1003
        %v1467 = vsel %vm443, %v699, %v1005
        %v1468 = vsel %vm444, %v700, %v1007
        %v1469 = vsel %vm445, %v701, %v1009
        %v1470 = vsel %vm446, %v702, %v1011
        %v1471 = vsel %vm447, %v703, %v1013
        %v1472 = vsel %vm448, %v704, %v1015
        %v1473 = vsel %vm449, %v705, %v1017
        %v1474 = vsel %vm450, %v706, %v1019
        %v1475 = vsel %vm451, %v707, %v1021
        %v1476 = vsel %vm452, %v708, %v1023
        %v1477 = vsel %vm453, %v709, %v1025
        %v1478 = vsel %vm454, %v710, %v1027
        %v1479 = vsel %vm455, %v711, %v1029
        %v1480 = vsel %vm456, %v712, %v1031
        %v1481 = vsel %vm457, %v713, %v1033
        %v1482 = vsel %vm458, %v714, %v1035
        %v1483 = vsel %vm459, %v715, %v1037
        %v1484 = vsel %vm460, %v716, %v1039
        %v1485 = vsel %vm461, %v717, %v1041
        %v1486 = vsel %vm462, %v718, %v1043
        %v1487 = vsel %vm463, %v719, %v1045
        %v1488 = vsel %vm464, %v720, %v1047
        %v1489 = vsel %vm465, %v721, %v1049
        %v1490 = vsel %vm466, %v722, %v1051
        %v1491 = vsel %vm467, %v723, %v1053
        %v1492 = vsel %vm468, %v724, %v1055
        %v1493 = vsel %vm469, %v725, %v1057
        %v1494 = vsel %vm470, %v726, %v1059
        %v1495 = vsel %vm471, %v727, %v1061
        %v1496 = vsel %vm472, %v728, %v1063
        %v1497 = vsel %vm473, %v729, %v1065
        %v1498 = vsel %vm474, %v730, %v1067
        %v1499 = vsel %vm475, %v731, %v1069
        %v1500 = vsel %vm476, %v732, %v1071
        %v1501 = vsel %vm477, %v733, %v1073
        %v1502 = vsel %vm478, %v734, %v1075
        %v1503 = vsel %vm479, %v735, %v1077
        %v1504 = vsel %vm480, %v736, %v1079
        %v1505 = vsel %vm481, %v737, %v1081
        %v1506 = vsel %vm482, %v738, %v1083
        %v1507 = vsel %vm483, %v739, %v1085
        %v1508 = vsel %vm484, %v740, %v1087
        %v1509 = vsel %vm485, %v741, %v1089
        %v1510 = vsel %vm486, %v742, %v1091
        %v1511 = vsel %vm487, %v743, %v1093
        %v1512 = vsel %vm488, %v744, %v1095
        %v1513 = vsel %vm489, %v745, %v1097
        %v1514 = vsel %vm490, %v746, %v1099
        %v1515 = vsel %vm491, %v747, %v1101
        %v1516 = vsel %vm492, %v748, %v1103
        %v1517 = vsel %vm493, %v749, %v1105
        %v1518 = vsel %vm494, %v750, %v1107
        %v1519 = vsel %vm495, %v751, %v1109
        %v1520 = vsel %vm496, %v752, %v1111
        %v1521 = vsel %vm497, %v753, %v1113
        %v1522 = vsel %vm498, %v754, %v1115
        %v1523 = vsel %vm499, %v755, %v1117
        %v1524 = vsel %vm500, %v756, %v1119
        %v1525 = vsel %vm501, %v757, %v1121
        %v1526 = vsel %vm502, %v758, %v1123
        %v1527 = vsel %vm503, %v759, %v1125
        %v1528 = vsel %vm504, %v760, %v1127
        %v1529 = vsel %vm505, %v761, %v1129
        %v1530 = vsel %vm506, %v762, %v1131
        %v1531 = vsel %vm507, %v763, %v1133
        %v1532 = vsel %vm508, %v764, %v1135
        %v1533 = vsel %vm509, %v765, %v1137
        %v1534 = vsel %vm510, %v766, %v1139
        %v1535 = vsel %vm511, %v767, %v1141
        %v1536 = vsel %vm512, %v768, %v1143
        %v1537 = vsel %vm513, %v769, %v1145
        %v1538 = vsel %vm514, %v770, %v1147
        %v1539 = vsel %vm515, %v771, %v1149
        %v1540 = vsel %vm516, %v772, %v1151
        %v1541 = vsel %vm517, %v773, %v1153
        %v1542 = vsel %vm518, %v774, %v1155
        %v1543 = vsel %vm519, %v775, %v1157
        %v1544 = vsel %vm520, %v776, %v1159
        %v1545 = vsel %vm521, %v777, %v1161
        %v1546 = vsel %vm522, %v778, %v1163
        %v1547 = vsel %vm523, %v779, %v1165
        %v1548 = vsel %vm524, %v780, %v1167
        %v1549 = vsel %vm525, %v781, %v1169
        %v1550 = vsel %vm526, %v782, %v1171
        %v1551 = vsel %vm527, %v783, %v1173
        %v1552 = vsel %vm528, %v784, %v1175
        %v1553 = vsel %vm529, %v785, %v1177
        %v1554 = vsel %vm530, %v786, %v1179
        %v1555 = vsel %vm531, %v787, %v1181
        %v1556 = vsel %vm532, %v788, %v1183
        %v1557 = vsel %vm533, %v789, %v1185
        %v1558 = vsel %vm534, %v790, %v1187
        %v1559 = vsel %vm535, %v791, %v1189
        %v1560 = vsel %vm536, %v792, %v1191
        %v1561 = vsel %vm537, %v793, %v1193
        %v1562 = vsel %vm538, %v794, %v1195
        %v1563 = vsel %vm539, %v795, %v1197
        %v1564 = vsel %vm540, %v796, %v1199
        %v1565 = vsel %vm541, %v797, %v1201
        %v1566 = vsel %vm542, %v798, %v1203
        %v1567 = vsel %vm543, %v799, %v1205
        %v1568 = vsel %vm544, %v800, %v1207
        %v1569 = vsel %vm545, %v801, %v1209
        %v1570 = vsel %vm546, %v802, %v1211
        %v1571 = vsel %vm547, %v803, %v1213
        %v1572 = vsel %vm548, %v804, %v1215
        %v1573 = vsel %vm549, %v805, %v1217
        %v1574 = vsel %vm550, %v806, %v1219
        %v1575 = vsel %vm551, %v807, %v1221
        %v1576 = vsel %vm552, %v808, %v1223
        %v1577 = vsel %vm553, %v809, %v1225
        %v1578 = vsel %vm554, %v810, %v1227
        %v1579 = vsel %vm555, %v811, %v1229
        %v1580 = vsel %vm556, %v812, %v1231
        %v1581 = vsel %vm557, %v813, %v1233
        %v1582 = vsel %vm558, %v814, %v1235
        %v1583 = vsel %vm559, %v815, %v1237
        %v1584 = vsel %vm560, %v816, %v1239
        %v1585 = vsel %vm561, %v817, %v1241
        %v1586 = vsel %vm562, %v818, %v1243
        %v1587 = vsel %vm563, %v819, %v1245
        %v1588 = vsel %vm564, %v820, %v1247
        %v1589 = vsel %vm565, %v821, %v1249
        %v1590 = vsel %vm566, %v822, %v1251
        %v1591 = vsel %vm567, %v823, %v1253
        %v1592 = vsel %vm568, %v824, %v1255
        %v1593 = vsel %vm569, %v825, %v1257
        %v1594 = vsel %vm570, %v826, %v1259
        %v1595 = vsel %vm571, %v827, %v1261
        %v1596 = vsel %vm572, %v828, %v1263
        %v1597 = vsel %vm573, %v829, %v1265
        %v1598 = vsel %vm574, %v830, %v1267
        %v1599 = vsel %vm575, %v831, %v1269
        %v1600 = vsel %vm576, %v832, %v1271
        %v1601 = vsel %vm577, %v833, %v1273
        %v1602 = vsel %vm578, %v834, %v1275
        %v1603 = vsel %vm579, %v835, %v1277
        %v1604 = vsel %vm580, %v836, %v1279
        %v1605 = vsel %vm581, %v837, %v1281
        %v1606 = vsel %vm582, %v838, %v1283
        %v1607 = vsel %vm583, %v839, %v1285
        %v1608 = vsel %vm584, %v840, %v1287
        %v1609 = vsel %vm585, %v841, %v1289
        %v1610 = vsel %vm586, %v842, %v1291
        %v1611 = vsel %vm587, %v843, %v1293
        %v1612 = vsel %vm588, %v844, %v1295
        %v1613 = vsel %vm589, %v845, %v1297
        %v1614 = vsel %vm590, %v846, %v1299
        %v1615 = vsel %vm591, %v847, %v1301
        %v1616 = vsel %vm592, %v848, %v1303
        %v1617 = vsel %vm593, %v849, %v1305
        %v1618 = vsel %vm594, %v850, %v1307
        %v1619 = vsel %vm595, %v851, %v1309
        %v1620 = vsel %vm596, %v852, %v1311
        %v1621 = vsel %vm597, %v853, %v1313
        %v1622 = vsel %vm598, %v854, %v1315
        %v1623 = vsel %vm599, %v855, %v1317
        %v1624 = vsel %vm600, %v856, %v1319
        %v1625 = vsel %vm601, %v857, %v1321
        %v1626 = vsel %vm602, %v858, %v1323
        %v1627 = vsel %vm603, %v859, %v1325
        %v1628 = vsel %vm604, %v860, %v1327
        %v1629 = vsel %vm605, %v861, %v1329
        %v1630 = vsel %vm606, %v862, %v1331
        %v1631 = vsel %vm607, %v863, %v1333
        %v1632 = vsel %vm608, %v864, %v1335
        %v1633 = vsel %vm609, %v865, %v1337
        %v1634 = vsel %vm610, %v866, %v1339
        %v1635 = vsel %vm611, %v867, %v1341
        %v1636 = vsel %vm612, %v868, %v1343
        %v1637 = vsel %vm613, %v869, %v1345
        %v1638 = vsel %vm614, %v870, %v1347
        %v1639 = vsel %vm615, %v871, %v1349
        %v1640 = vsel %vm616, %v872, %v1351
        %v1641 = vsel %vm617, %v873, %v1353
        %v1642 = vsel %vm618, %v874, %v1355
        %v1643 = vsel %vm619, %v875, %v1357
        %v1644 = vsel %vm620, %v876, %v1359
        %v1645 = vsel %vm621, %v877, %v1361
        %v1646 = vsel %vm622, %v878, %v1363
        %v1647 = vsel %vm623, %v879, %v1365
        %v1648 = vsel %vm624, %v880, %v1367
        %v1649 = vsel %vm625, %v881, %v1369
        %v1650 = vsel %vm626, %v882, %v1371
        %v1651 = vsel %vm627, %v883, %v1373
        %v1652 = vsel %vm628, %v884, %v1375
        %v1653 = vsel %vm629, %v885, %v1377
        %v1654 = vsel %vm630, %v886, %v1379
        %v1655 = vsel %vm631, %v887, %v1381
        %v1656 = vsel %vm632, %v888, %v1383
        %v1657 = vsel %vm633, %v889, %v1385
        %v1658 = vsel %vm634, %v890, %v1387
        %v1659 = vsel %vm635, %v891, %v1389
        %v1660 = vsel %vm636, %v892, %v1391
        %v1661 = vsel %vm637, %v893, %v1393
        %v1662 = vsel %vm638, %v894, %v1395
        %v1663 = vsel %vm639, %v895, %v1397
        %v1664 = vsel %vm640, %v896, %v1399
        %v1665 = vsel %vm641, %v897, %v1401
        %v1666 = vsel %vm642, %v898, %v1403
        %v1667 = vsel %vm643, %v899, %v1405
        %v1668 = vsel %vm644, %v900, %v1407
        %v1669 = vsel %vm645, %v901, %v1409
        %v1670 = vsel %vm646, %v902, %v1411
        %v1671 = vsel %vm647, %v903, %v1413
        %v1672 = vsel %vm648, %v904, %v1415
        %v1673 = vsel %vm649, %v905, %v1417
        %1674 = vst [vmem:[%s135] sm:$0xff] %v1418
        %1675 = vst [vmem:[%s135 + $0x8] sm:$0xff] %v1419
        %1676 = vst [vmem:[%s135 + $0x10] sm:$0xff] %v1420
        %1677 = vst [vmem:[%s135 + $0x18] sm:$0xff] %v1421
        %1678 = vst [vmem:[%s135 + $0x20] sm:$0xff] %v1422
        %1679 = vst [vmem:[%s135 + $0x28] sm:$0xff] %v1423
        %1680 = vst [vmem:[%s135 + $0x30] sm:$0xff] %v1424
        %1681 = vst [vmem:[%s135 + $0x38] sm:$0xff] %v1425
        %1682 = vst [vmem:[%s135 + $0x40] sm:$0xff] %v1426
        %1683 = vst [vmem:[%s135 + $0x48] sm:$0xff] %v1427
        %1684 = vst [vmem:[%s135 + $0x50] sm:$0xff] %v1428
        %1685 = vst [vmem:[%s135 + $0x58] sm:$0xff] %v1429
        %1686 = vst [vmem:[%s135 + $0x60] sm:$0xff] %v1430
        %1687 = vst [vmem:[%s135 + $0x68] sm:$0xff] %v1431
        %1688 = vst [vmem:[%s135 + $0x70] sm:$0xff] %v1432
        %1689 = vst [vmem:[%s135 + $0x78] sm:$0xff] %v1433
        %1690 = vst [vmem:[%s135 + $0x80] sm:$0xff] %v1434
        %1691 = vst [vmem:[%s135 + $0x88] sm:$0xff] %v1435
        %1692 = vst [vmem:[%s135 + $0x90] sm:$0xff] %v1436
        %1693 = vst [vmem:[%s135 + $0x98] sm:$0xff] %v1437
        %1694 = vst [vmem:[%s135 + $0xa0] sm:$0xff] %v1438
        %1695 = vst [vmem:[%s135 + $0xa8] sm:$0xff] %v1439
        %1696 = vst [vmem:[%s135 + $0xb0] sm:$0xff] %v1440
        %1697 = vst [vmem:[%s135 + $0xb8] sm:$0xff] %v1441
        %1698 = vst [vmem:[%s135 + $0xc0] sm:$0xff] %v1442
        %1699 = vst [vmem:[%s135 + $0xc8] sm:$0xff] %v1443
        %1700 = vst [vmem:[%s135 + $0xd0] sm:$0xff] %v1444
        %1701 = vst [vmem:[%s135 + $0xd8] sm:$0xff] %v1445
        %1702 = vst [vmem:[%s135 + $0xe0] sm:$0xff] %v1446
        %1703 = vst [vmem:[%s135 + $0xe8] sm:$0xff] %v1447
        %1704 = vst [vmem:[%s135 + $0xf0] sm:$0xff] %v1448
        %1705 = vst [vmem:[%s135 + $0xf8] sm:$0xff] %v1449
        %1706 = vst [vmem:[%s135 + $0x100] sm:$0xff] %v1450
        %1707 = vst [vmem:[%s135 + $0x108] sm:$0xff] %v1451
        %1708 = vst [vmem:[%s135 + $0x110] sm:$0xff] %v1452
        %1709 = vst [vmem:[%s135 + $0x118] sm:$0xff] %v1453
        %1710 = vst [vmem:[%s135 + $0x120] sm:$0xff] %v1454
        %1711 = vst [vmem:[%s135 + $0x128] sm:$0xff] %v1455
        %1712 = vst [vmem:[%s135 + $0x130] sm:$0xff] %v1456
        %1713 = vst [vmem:[%s135 + $0x138] sm:$0xff] %v1457
        %1714 = vst [vmem:[%s135 + $0x140] sm:$0xff] %v1458
        %1715 = vst [vmem:[%s135 + $0x148] sm:$0xff] %v1459
        %1716 = vst [vmem:[%s135 + $0x150] sm:$0xff] %v1460
        %1717 = vst [vmem:[%s135 + $0x158] sm:$0xff] %v1461
        %1718 = vst [vmem:[%s135 + $0x160] sm:$0xff] %v1462
        %1719 = vst [vmem:[%s135 + $0x168] sm:$0xff] %v1463
        %1720 = vst [vmem:[%s135 + $0x170] sm:$0xff] %v1464
        %1721 = vst [vmem:[%s135 + $0x178] sm:$0xff] %v1465
        %1722 = vst [vmem:[%s135 + $0x180] sm:$0xff] %v1466
        %1723 = vst [vmem:[%s135 + $0x188] sm:$0xff] %v1467
        %1724 = vst [vmem:[%s135 + $0x190] sm:$0xff] %v1468
        %1725 = vst [vmem:[%s135 + $0x198] sm:$0xff] %v1469
        %1726 = vst [vmem:[%s135 + $0x1a0] sm:$0xff] %v1470
        %1727 = vst [vmem:[%s135 + $0x1a8] sm:$0xff] %v1471
        %1728 = vst [vmem:[%s135 + $0x1b0] sm:$0xff] %v1472
        %1729 = vst [vmem:[%s135 + $0x1b8] sm:$0xff] %v1473
        %1730 = vst [vmem:[%s135 + $0x1c0] sm:$0xff] %v1474
        %1731 = vst [vmem:[%s135 + $0x1c8] sm:$0xff] %v1475
        %1732 = vst [vmem:[%s135 + $0x1d0] sm:$0xff] %v1476
        %1733 = vst [vmem:[%s135 + $0x1d8] sm:$0xff] %v1477
        %1734 = vst [vmem:[%s135 + $0x1e0] sm:$0xff] %v1478
        %1735 = vst [vmem:[%s135 + $0x1e8] sm:$0xff] %v1479
        %1736 = vst [vmem:[%s135 + $0x1f0] sm:$0xff] %v1480
        %1737 = vst [vmem:[%s135 + $0x1f8] sm:$0xff] %v1481
        %1738 = vst [vmem:[%s135 + $0x200] sm:$0xff] %v1482
        %1739 = vst [vmem:[%s135 + $0x208] sm:$0xff] %v1483
        %1740 = vst [vmem:[%s135 + $0x210] sm:$0xff] %v1484
        %1741 = vst [vmem:[%s135 + $0x218] sm:$0xff] %v1485
        %1742 = vst [vmem:[%s135 + $0x220] sm:$0xff] %v1486
        %1743 = vst [vmem:[%s135 + $0x228] sm:$0xff] %v1487
        %1744 = vst [vmem:[%s135 + $0x230] sm:$0xff] %v1488
        %1745 = vst [vmem:[%s135 + $0x238] sm:$0xff] %v1489
        %1746 = vst [vmem:[%s135 + $0x240] sm:$0xff] %v1490
        %1747 = vst [vmem:[%s135 + $0x248] sm:$0xff] %v1491
        %1748 = vst [vmem:[%s135 + $0x250] sm:$0xff] %v1492
        %1749 = vst [vmem:[%s135 + $0x258] sm:$0xff] %v1493
        %1750 = vst [vmem:[%s135 + $0x260] sm:$0xff] %v1494
        %1751 = vst [vmem:[%s135 + $0x268] sm:$0xff] %v1495
        %1752 = vst [vmem:[%s135 + $0x270] sm:$0xff] %v1496
        %1753 = vst [vmem:[%s135 + $0x278] sm:$0xff] %v1497
        %1754 = vst [vmem:[%s135 + $0x280] sm:$0xff] %v1498
        %1755 = vst [vmem:[%s135 + $0x288] sm:$0xff] %v1499
        %1756 = vst [vmem:[%s135 + $0x290] sm:$0xff] %v1500
        %1757 = vst [vmem:[%s135 + $0x298] sm:$0xff] %v1501
        %1758 = vst [vmem:[%s135 + $0x2a0] sm:$0xff] %v1502
        %1759 = vst [vmem:[%s135 + $0x2a8] sm:$0xff] %v1503
        %1760 = vst [vmem:[%s135 + $0x2b0] sm:$0xff] %v1504
        %1761 = vst [vmem:[%s135 + $0x2b8] sm:$0xff] %v1505
        %1762 = vst [vmem:[%s135 + $0x2c0] sm:$0xff] %v1506
        %1763 = vst [vmem:[%s135 + $0x2c8] sm:$0xff] %v1507
        %1764 = vst [vmem:[%s135 + $0x2d0] sm:$0xff] %v1508
        %1765 = vst [vmem:[%s135 + $0x2d8] sm:$0xff] %v1509
        %1766 = vst [vmem:[%s135 + $0x2e0] sm:$0xff] %v1510
        %1767 = vst [vmem:[%s135 + $0x2e8] sm:$0xff] %v1511
        %1768 = vst [vmem:[%s135 + $0x2f0] sm:$0xff] %v1512
        %1769 = vst [vmem:[%s135 + $0x2f8] sm:$0xff] %v1513
        %1770 = vst [vmem:[%s135 + $0x300] sm:$0xff] %v1514
        %1771 = vst [vmem:[%s135 + $0x308] sm:$0xff] %v1515
        %1772 = vst [vmem:[%s135 + $0x310] sm:$0xff] %v1516
        %1773 = vst [vmem:[%s135 + $0x318] sm:$0xff] %v1517
        %1774 = vst [vmem:[%s135 + $0x320] sm:$0xff] %v1518
        %1775 = vst [vmem:[%s135 + $0x328] sm:$0xff] %v1519
        %1776 = vst [vmem:[%s135 + $0x330] sm:$0xff] %v1520
        %1777 = vst [vmem:[%s135 + $0x338] sm:$0xff] %v1521
        %1778 = vst [vmem:[%s135 + $0x340] sm:$0xff] %v1522
        %1779 = vst [vmem:[%s135 + $0x348] sm:$0xff] %v1523
        %1780 = vst [vmem:[%s135 + $0x350] sm:$0xff] %v1524
        %1781 = vst [vmem:[%s135 + $0x358] sm:$0xff] %v1525
        %1782 = vst [vmem:[%s135 + $0x360] sm:$0xff] %v1526
        %1783 = vst [vmem:[%s135 + $0x368] sm:$0xff] %v1527
        %1784 = vst [vmem:[%s135 + $0x370] sm:$0xff] %v1528
        %1785 = vst [vmem:[%s135 + $0x378] sm:$0xff] %v1529
        %1786 = vst [vmem:[%s135 + $0x380] sm:$0xff] %v1530
        %1787 = vst [vmem:[%s135 + $0x388] sm:$0xff] %v1531
        %1788 = vst [vmem:[%s135 + $0x390] sm:$0xff] %v1532
        %1789 = vst [vmem:[%s135 + $0x398] sm:$0xff] %v1533
        %1790 = vst [vmem:[%s135 + $0x3a0] sm:$0xff] %v1534
        %1791 = vst [vmem:[%s135 + $0x3a8] sm:$0xff] %v1535
        %1792 = vst [vmem:[%s135 + $0x3b0] sm:$0xff] %v1536
        %1793 = vst [vmem:[%s135 + $0x3b8] sm:$0xff] %v1537
        %1794 = vst [vmem:[%s135 + $0x3c0] sm:$0xff] %v1538
        %1795 = vst [vmem:[%s135 + $0x3c8] sm:$0xff] %v1539
        %1796 = vst [vmem:[%s135 + $0x3d0] sm:$0xff] %v1540
        %1797 = vst [vmem:[%s135 + $0x3d8] sm:$0xff] %v1541
        %1798 = vst [vmem:[%s135 + $0x3e0] sm:$0xff] %v1542
        %1799 = vst [vmem:[%s135 + $0x3e8] sm:$0xff] %v1543
        %1800 = vst [vmem:[%s135 + $0x3f0] sm:$0xff] %v1544
        %1801 = vst [vmem:[%s135 + $0x3f8] sm:$0xff] %v1545
        %1802 = vst [vmem:[%s135 + $0x400] sm:$0xff] %v1546
        %1803 = vst [vmem:[%s135 + $0x408] sm:$0xff] %v1547
        %1804 = vst [vmem:[%s135 + $0x410] sm:$0xff] %v1548
        %1805 = vst [vmem:[%s135 + $0x418] sm:$0xff] %v1549
        %1806 = vst [vmem:[%s135 + $0x420] sm:$0xff] %v1550
        %1807 = vst [vmem:[%s135 + $0x428] sm:$0xff] %v1551
        %1808 = vst [vmem:[%s135 + $0x430] sm:$0xff] %v1552
        %1809 = vst [vmem:[%s135 + $0x438] sm:$0xff] %v1553
        %1810 = vst [vmem:[%s135 + $0x440] sm:$0xff] %v1554
        %1811 = vst [vmem:[%s135 + $0x448] sm:$0xff] %v1555
        %1812 = vst [vmem:[%s135 + $0x450] sm:$0xff] %v1556
        %1813 = vst [vmem:[%s135 + $0x458] sm:$0xff] %v1557
        %1814 = vst [vmem:[%s135 + $0x460] sm:$0xff] %v1558
        %1815 = vst [vmem:[%s135 + $0x468] sm:$0xff] %v1559
        %1816 = vst [vmem:[%s135 + $0x470] sm:$0xff] %v1560
        %1817 = vst [vmem:[%s135 + $0x478] sm:$0xff] %v1561
        %1818 = vst [vmem:[%s135 + $0x480] sm:$0xff] %v1562
        %1819 = vst [vmem:[%s135 + $0x488] sm:$0xff] %v1563
        %1820 = vst [vmem:[%s135 + $0x490] sm:$0xff] %v1564
        %1821 = vst [vmem:[%s135 + $0x498] sm:$0xff] %v1565
        %1822 = vst [vmem:[%s135 + $0x4a0] sm:$0xff] %v1566
        %1823 = vst [vmem:[%s135 + $0x4a8] sm:$0xff] %v1567
        %1824 = vst [vmem:[%s135 + $0x4b0] sm:$0xff] %v1568
        %1825 = vst [vmem:[%s135 + $0x4b8] sm:$0xff] %v1569
        %1826 = vst [vmem:[%s135 + $0x4c0] sm:$0xff] %v1570
        %1827 = vst [vmem:[%s135 + $0x4c8] sm:$0xff] %v1571
        %1828 = vst [vmem:[%s135 + $0x4d0] sm:$0xff] %v1572
        %1829 = vst [vmem:[%s135 + $0x4d8] sm:$0xff] %v1573
        %1830 = vst [vmem:[%s135 + $0x4e0] sm:$0xff] %v1574
        %1831 = vst [vmem:[%s135 + $0x4e8] sm:$0xff] %v1575
        %1832 = vst [vmem:[%s135 + $0x4f0] sm:$0xff] %v1576
        %1833 = vst [vmem:[%s135 + $0x4f8] sm:$0xff] %v1577
        %1834 = vst [vmem:[%s135 + $0x500] sm:$0xff] %v1578
        %1835 = vst [vmem:[%s135 + $0x508] sm:$0xff] %v1579
        %1836 = vst [vmem:[%s135 + $0x510] sm:$0xff] %v1580
        %1837 = vst [vmem:[%s135 + $0x518] sm:$0xff] %v1581
        %1838 = vst [vmem:[%s135 + $0x520] sm:$0xff] %v1582
        %1839 = vst [vmem:[%s135 + $0x528] sm:$0xff] %v1583
        %1840 = vst [vmem:[%s135 + $0x530] sm:$0xff] %v1584
        %1841 = vst [vmem:[%s135 + $0x538] sm:$0xff] %v1585
        %1842 = vst [vmem:[%s135 + $0x540] sm:$0xff] %v1586
        %1843 = vst [vmem:[%s135 + $0x548] sm:$0xff] %v1587
        %1844 = vst [vmem:[%s135 + $0x550] sm:$0xff] %v1588
        %1845 = vst [vmem:[%s135 + $0x558] sm:$0xff] %v1589
        %1846 = vst [vmem:[%s135 + $0x560] sm:$0xff] %v1590
        %1847 = vst [vmem:[%s135 + $0x568] sm:$0xff] %v1591
        %1848 = vst [vmem:[%s135 + $0x570] sm:$0xff] %v1592
        %1849 = vst [vmem:[%s135 + $0x578] sm:$0xff] %v1593
        %1850 = vst [vmem:[%s135 + $0x580] sm:$0xff] %v1594
        %1851 = vst [vmem:[%s135 + $0x588] sm:$0xff] %v1595
        %1852 = vst [vmem:[%s135 + $0x590] sm:$0xff] %v1596
        %1853 = vst [vmem:[%s135 + $0x598] sm:$0xff] %v1597
        %1854 = vst [vmem:[%s135 + $0x5a0] sm:$0xff] %v1598
        %1855 = vst [vmem:[%s135 + $0x5a8] sm:$0xff] %v1599
        %1856 = vst [vmem:[%s135 + $0x5b0] sm:$0xff] %v1600
        %1857 = vst [vmem:[%s135 + $0x5b8] sm:$0xff] %v1601
        %1858 = vst [vmem:[%s135 + $0x5c0] sm:$0xff] %v1602
        %1859 = vst [vmem:[%s135 + $0x5c8] sm:$0xff] %v1603
        %1860 = vst [vmem:[%s135 + $0x5d0] sm:$0xff] %v1604
        %1861 = vst [vmem:[%s135 + $0x5d8] sm:$0xff] %v1605
        %1862 = vst [vmem:[%s135 + $0x5e0] sm:$0xff] %v1606
        %1863 = vst [vmem:[%s135 + $0x5e8] sm:$0xff] %v1607
        %1864 = vst [vmem:[%s135 + $0x5f0] sm:$0xff] %v1608
        %1865 = vst [vmem:[%s135 + $0x5f8] sm:$0xff] %v1609
        %1866 = vst [vmem:[%s135 + $0x600] sm:$0xff] %v1610
        %1867 = vst [vmem:[%s135 + $0x608] sm:$0xff] %v1611
        %1868 = vst [vmem:[%s135 + $0x610] sm:$0xff] %v1612
        %1869 = vst [vmem:[%s135 + $0x618] sm:$0xff] %v1613
        %1870 = vst [vmem:[%s135 + $0x620] sm:$0xff] %v1614
        %1871 = vst [vmem:[%s135 + $0x628] sm:$0xff] %v1615
        %1872 = vst [vmem:[%s135 + $0x630] sm:$0xff] %v1616
        %1873 = vst [vmem:[%s135 + $0x638] sm:$0xff] %v1617
        %1874 = vst [vmem:[%s135 + $0x640] sm:$0xff] %v1618
        %1875 = vst [vmem:[%s135 + $0x648] sm:$0xff] %v1619
        %1876 = vst [vmem:[%s135 + $0x650] sm:$0xff] %v1620
        %1877 = vst [vmem:[%s135 + $0x658] sm:$0xff] %v1621
        %1878 = vst [vmem:[%s135 + $0x660] sm:$0xff] %v1622
        %1879 = vst [vmem:[%s135 + $0x668] sm:$0xff] %v1623
        %1880 = vst [vmem:[%s135 + $0x670] sm:$0xff] %v1624
        %1881 = vst [vmem:[%s135 + $0x678] sm:$0xff] %v1625
        %1882 = vst [vmem:[%s135 + $0x680] sm:$0xff] %v1626
        %1883 = vst [vmem:[%s135 + $0x688] sm:$0xff] %v1627
        %1884 = vst [vmem:[%s135 + $0x690] sm:$0xff] %v1628
        %1885 = vst [vmem:[%s135 + $0x698] sm:$0xff] %v1629
        %1886 = vst [vmem:[%s135 + $0x6a0] sm:$0xff] %v1630
        %1887 = vst [vmem:[%s135 + $0x6a8] sm:$0xff] %v1631
        %1888 = vst [vmem:[%s135 + $0x6b0] sm:$0xff] %v1632
        %1889 = vst [vmem:[%s135 + $0x6b8] sm:$0xff] %v1633
        %1890 = vst [vmem:[%s135 + $0x6c0] sm:$0xff] %v1634
        %1891 = vst [vmem:[%s135 + $0x6c8] sm:$0xff] %v1635
        %1892 = vst [vmem:[%s135 + $0x6d0] sm:$0xff] %v1636
        %1893 = vst [vmem:[%s135 + $0x6d8] sm:$0xff] %v1637
        %1894 = vst [vmem:[%s135 + $0x6e0] sm:$0xff] %v1638
        %1895 = vst [vmem:[%s135 + $0x6e8] sm:$0xff] %v1639
        %1896 = vst [vmem:[%s135 + $0x6f0] sm:$0xff] %v1640
        %1897 = vst [vmem:[%s135 + $0x6f8] sm:$0xff] %v1641
        %1898 = vst [vmem:[%s135 + $0x700] sm:$0xff] %v1642
        %1899 = vst [vmem:[%s135 + $0x708] sm:$0xff] %v1643
        %1900 = vst [vmem:[%s135 + $0x710] sm:$0xff] %v1644
        %1901 = vst [vmem:[%s135 + $0x718] sm:$0xff] %v1645
        %1902 = vst [vmem:[%s135 + $0x720] sm:$0xff] %v1646
        %1903 = vst [vmem:[%s135 + $0x728] sm:$0xff] %v1647
        %1904 = vst [vmem:[%s135 + $0x730] sm:$0xff] %v1648
        %1905 = vst [vmem:[%s135 + $0x738] sm:$0xff] %v1649
        %1906 = vst [vmem:[%s135 + $0x740] sm:$0xff] %v1650
        %1907 = vst [vmem:[%s135 + $0x748] sm:$0xff] %v1651
        %1908 = vst [vmem:[%s135 + $0x750] sm:$0xff] %v1652
        %1909 = vst [vmem:[%s135 + $0x758] sm:$0xff] %v1653
        %1910 = vst [vmem:[%s135 + $0x760] sm:$0xff] %v1654
        %1911 = vst [vmem:[%s135 + $0x768] sm:$0xff] %v1655
        %1912 = vst [vmem:[%s135 + $0x770] sm:$0xff] %v1656
        %1913 = vst [vmem:[%s135 + $0x778] sm:$0xff] %v1657
        %1914 = vst [vmem:[%s135 + $0x780] sm:$0xff] %v1658
        %1915 = vst [vmem:[%s135 + $0x788] sm:$0xff] %v1659
        %1916 = vst [vmem:[%s135 + $0x790] sm:$0xff] %v1660
        %1917 = vst [vmem:[%s135 + $0x798] sm:$0xff] %v1661
        %1918 = vst [vmem:[%s135 + $0x7a0] sm:$0xff] %v1662
        %1919 = vst [vmem:[%s135 + $0x7a8] sm:$0xff] %v1663
        %1920 = vst [vmem:[%s135 + $0x7b0] sm:$0xff] %v1664
        %1921 = vst [vmem:[%s135 + $0x7b8] sm:$0xff] %v1665
        %1922 = vst [vmem:[%s135 + $0x7c0] sm:$0xff] %v1666
        %1923 = vst [vmem:[%s135 + $0x7c8] sm:$0xff] %v1667
        %1924 = vst [vmem:[%s135 + $0x7d0] sm:$0xff] %v1668
        %1925 = vst [vmem:[%s135 + $0x7d8] sm:$0xff] %v1669
        %1926 = vst [vmem:[%s135 + $0x7e0] sm:$0xff] %v1670
        %1927 = vst [vmem:[%s135 + $0x7e8] sm:$0xff] %v1671
        %1928 = vst [vmem:[%s135 + $0x7f0] sm:$0xff] %v1672
        %1929 = vst [vmem:[%s135 + $0x7f8] sm:$0xff] %v1673
        %s1930 = sand.u32 %s52, 1
        %s1931 = scalar_lea.sflag [#allocation4], %s1930
        %s1932 = sand.u32 %s52, 1
        %s1933 = smul.addr %s1932, 2048
        %s1934 = scalar_lea.vmem [#allocation5], %s1933
        // Predicated region
        $region29: #{tpu_custom_call.1} parent=23 // pred_check
          %p1935 = pneg %p62
        $region30: #{tpu_custom_call.1} parent=23 // pred_check_branch
          %1937 = sbr.rel (%p1935) target = $region32
        $region31: #{tpu_custom_call.1} parent=23 // pred_region
          %s1938 = smul.u32 16, %s18
          %s1940 = ssub.s32 32768, 32768
          %1941 = vsyncadd %s1931, %s1940
          %s1942 = smul.addr %s1938, 16
          %s1943 = smul.addr %s1942, 128
          %s1944 = scalar_lea.hbm %s1, %s1943
          %s1945 = sshll.u32 %s1934, 4
          %s1946 = int_to_ptr.vmem [resolvable:$true] %s1945
          %1951 = dma.vmem_to_hbm [thread:$0]  %s1946, 32768, %s1944, %s1931, 2048, 2048, 128
        $region32: #{tpu_custom_call.1} parent=23 // pred_fallthru
          _
      $region24: #{tpu_custom_call.1} parent=5 // pred_fallthru
        _
      %p1952 = scmp.le.s32.totalorder 2, %s13
      // Predicated region
      $region33: #{tpu_custom_call.1} parent=5 // pred_check
        %p1953 = pneg %p1952
      $region34: #{tpu_custom_call.1} parent=5 // pred_check_branch
        %1955 = sbr.rel (%p1953) target = $region36
      $region35: #{tpu_custom_call.1} parent=5 // pred_region
        %s1956 = ssub.s32 %s13, 2
        // Predicated region
        $region37: #{tpu_custom_call.1} parent=35 // pred_check
          %p1957 = pneg %p68
        $region38: #{tpu_custom_call.1} parent=35 // pred_check_branch
          %1959 = sbr.rel (%p1957) target = $region40
        $region39: #{tpu_custom_call.1} parent=35 // pred_region
          %s1960 = sand.u32 %s53, 1
          %s1961 = scalar_lea.sflag [#allocation4], %s1960
          %s1962 = sand.u32 %s53, 1
          %s1963 = smul.addr %s1962, 2048
          %s1964 = scalar_lea.vmem [#allocation5], %s1963
          %1965 = dma.done %s1961, 32768
        $region40: #{tpu_custom_call.1} parent=35 // pred_fallthru
          _
      $region36: #{tpu_custom_call.1} parent=5 // pred_fallthru
        _
    $region6: #{tpu_custom_call.1} parent=1 // loop_footer
      %s17 = sadd.s32 1, %s13
    $region7: #{tpu_custom_call.1} parent=1 // loop_footer_branch
      %12 = sbr.rel target = $region3
    $region8: #{tpu_custom_call.1} parent=1 // loop_exit
      _
    %1966 = vsyncpa [#allocation3], 1
    %s1967 = scalar_lea.sflag [#allocation3], 1
    %1968 = vsyncpa %s1967, 1
    %1969 = vsyncpa [#allocation4], 1
    %s1970 = scalar_lea.sflag [#allocation4], 1
    %1971 = vsyncpa %s1970, 1

</llo_original>
